<compile_context>
chip_gen: v7x
topology: tpu7x:2x2x1
jax: 0.10.0
libtpu: 0.0.40
codegen_flags: <defaults>
</compile_context>

<pallas_src>
import jax
import jax.numpy as jnp
from jax.experimental import pallas as pl
from jax.experimental.pallas import tpu as pltpu

LANE = 128  # TPU lane width; padded hidden feature width

# Resident weights only need one VMEM buffer (their block index never changes).
# If this JAX build rejects pl.Buffered(1), we fall back to default buffering.
_WEIGHTS_SINGLE_BUFFERED = True


# ----------------------------- Pallas kernel --------------------------------
def deformnet_kernel(x_ref, w0_ref, w1_ref, w2_ref, b01_ref, b2_ref, o_ref):
    """Fused 3-layer MLP: relu(xW0+b0) -> relu(.W1+b1) -> .W2+b2.

    W0/W1 are zero-padded to 128(H) output lanes so the hidden activations are
    lane-dense; W2 keeps its true (3-wide) output so the HBM writeback is
    narrow. Biases b0,b1 are packed into b01_ref (2, H) f32; b2_ref is (1, 3).
    All matmuls accumulate in f32; bias+ReLU epilogue is f32 (v5e-safe).
    """
    w_dtype = w0_ref.dtype

    x = x_ref[...]                                             # (tm, d_in)
    h = jnp.dot(x, w0_ref[...], preferred_element_type=jnp.float32)
    h = jnp.maximum(h + b01_ref[0:1, :], 0.0)                  # ReLU, f32

    h = jnp.dot(h.astype(w_dtype), w1_ref[...],
                preferred_element_type=jnp.float32)
    h = jnp.maximum(h + b01_ref[1:2, :], 0.0)                  # ReLU, f32

    out = jnp.dot(h.astype(w_dtype), w2_ref[...],
                  preferred_element_type=jnp.float32)          # (tm, 3)
    out = out + b2_ref[...]                                    # final layer: no activation

    o_ref[...] = out.astype(o_ref.dtype)                       # narrow (tm, 3) store


# ------------------------------ wrapper --------------------------------------
def _round_up(v, m):
    return ((v + m - 1) // m) * m


def _pack_params(params, w_dtype):
    """Zero-pad hidden feature axes to a multiple of 128 lanes (exact math:
    padded lanes stay zero through bias/ReLU and contribute nothing). The
    final layer keeps its true output width so the kernel writes a narrow
    (N, 3) result."""
    w0, b0 = params["w0"], params["b0"]
    w1, b1 = params["w1"], params["b1"]
    w2, b2 = params["w2"], params["b2"]

    h_pad = max(_round_up(w0.shape[1], LANE), _round_up(w1.shape[1], LANE))

    def pad_cols(a, width):
        return jnp.pad(a, ((0, 0), (0, width - a.shape[1])))

    def pad_rows(a, height):
        return jnp.pad(a, ((0, height - a.shape[0]), (0, 0)))

    w0p = pad_cols(w0, h_pad).astype(w_dtype)                      # (d_in, H)
    w1p = pad_cols(pad_rows(w1, h_pad), h_pad).astype(w_dtype)     # (H, H)
    w2p = pad_rows(w2, h_pad).astype(w_dtype)                      # (H, 3)
    b01 = jnp.concatenate(
        [pad_cols(b0.reshape(1, -1), h_pad),
         pad_cols(b1.reshape(1, -1), h_pad)], axis=0).astype(jnp.float32)  # (2, H)
    b2p = b2.reshape(1, -1).astype(jnp.float32)                    # (1, 3)
    return w0p, w1p, w2p, b01, b2p


def _choose_tile(n_rows, tm):
    """Large row tiles (amortize ~0.35us/grid-step) with an EVEN step count so
    v7x's two TensorCores (grid axis marked "parallel") get balanced work."""
    if tm is not None:
        return max(8, (tm // 8) * 8)
    target = 4096
    if n_rows <= target:
        if n_rows >= 16:
            # two tiles -> 2 grid steps (one per v7x TensorCore)
            return max(8, pl.cdiv(pl.cdiv(n_rows, 2), 8) * 8)
        return max(8, pl.cdiv(n_rows, 8) * 8)
    pairs = pl.cdiv(n_rows, 2 * target)          # number of step pairs
    tile = pl.cdiv(pl.cdiv(n_rows, 2 * pairs), 8) * 8
    return tile


def deformnet_forward(x, params, *, tm=None, compute_dtype=jnp.bfloat16,
                      out_dtype=None):
    """x: [N, latent_size + 3]; params: weights (in,out) and biases (1,out).

    compute_dtype: streaming dtype for x and the weight slabs (default bf16,
    f32 accumulation). Use jnp.float32 for exact (reference-matching) math.
    """
    global _WEIGHTS_SINGLE_BUFFERED

    N, d_in = x.shape
    d_out = params["w2"].shape[1]
    if out_dtype is None:
        out_dtype = x.dtype

    w0p, w1p, w2p, b01, b2p = _pack_params(params, compute_dtype)
    H = w1p.shape[0]
    assert d_in == w0p.shape[0]

    # Only cast when needed; under jit this fuses into x's producer.
    x_in = x if x.dtype == jnp.dtype(compute_dtype) else x.astype(compute_dtype)

    tile_m = _choose_tile(N, tm)
    grid = (pl.cdiv(N, tile_m),)        # partial last block handled by Pallas

    # Advisory cost estimate for XLA scheduling.
    flops = int(2 * N * (d_in * H + H * H + H * d_out))
    bytes_accessed = int(
        x_in.size * x_in.dtype.itemsize
        + N * d_out * jnp.dtype(out_dtype).itemsize
        + sum(int(a.size) * a.dtype.itemsize for a in (w0p, w1p, w2p, b01, b2p)))

    const = lambda i: (0, 0)  # resident weights / biases: single block

    def run(single_buffer_weights):
        wkw = ({"pipeline_mode": pl.Buffered(1)}
               if single_buffer_weights else {})
        return pl.pallas_call(
            deformnet_kernel,
            out_shape=jax.ShapeDtypeStruct((N, d_out), out_dtype),
            grid_spec=pltpu.PrefetchScalarGridSpec(
                num_scalar_prefetch=0,
                grid=grid,
                in_specs=[
                    pl.BlockSpec((tile_m, d_in), lambda i: (i, 0)),  # x tile
                    pl.BlockSpec((d_in, H), const, **wkw),           # W0 (padded)
                    pl.BlockSpec((H, H), const, **wkw),              # W1 (padded)
                    pl.BlockSpec((H, d_out), const, **wkw),          # W2 (narrow out)
                    pl.BlockSpec((2, H), const, **wkw),              # b0|b1 slab
                    pl.BlockSpec((1, d_out), const, **wkw),          # b2
                ],
                out_specs=pl.BlockSpec((tile_m, d_out), lambda i: (i, 0)),
            ),
            compiler_params=pltpu.CompilerParams(
                dimension_semantics=("parallel",),
                vmem_limit_bytes=32 * 1024 * 1024,   # headroom for big f32 tiles on v5e
            ),
            cost_estimate=pl.CostEstimate(
                flops=flops, transcendentals=0, bytes_accessed=bytes_accessed),
        )(x_in, w0p, w1p, w2p, b01, b2p)

    if _WEIGHTS_SINGLE_BUFFERED:
        try:
            return run(True)
        except Exception:
            # pl.Buffered(1) unsupported in this build: fall back (correctness first).
            _WEIGHTS_SINGLE_BUFFERED = False
    return run(False)


# ------------------------- parameter construction ---------------------------
def init_deformnet_params(key, latent_size, init_dims):
    """Deterministic init mimicking nn.Linear default (U(-1/sqrt(in), +1/sqrt(in))).
    Weights stored as (in_features, out_features)."""
    xyz_dims = 3
    dims_init = [latent_size + xyz_dims] + list(init_dims) + [3]
    params = {}
    for layer in range(len(dims_init) - 1):
        in_dim, out_dim = dims_init[layer], dims_init[layer + 1]
        key, kw, kb = jax.random.split(key, 3)
        bound = 1.0 / jnp.sqrt(jnp.float32(in_dim))
        w = jax.random.uniform(kw, (in_dim, out_dim), jnp.float32, -bound, bound)
        b = jax.random.uniform(kb, (1, out_dim), jnp.float32, -bound, bound)
        params[f"w{layer}"] = w
        params[f"b{layer}"] = b
    return params


# ------------------------------ reference -----------------------------------
def deformnet_reference(x, params):
    h = jnp.maximum(x @ params["w0"] + params["b0"], 0.0)
    h = jnp.maximum(h @ params["w1"] + params["b1"], 0.0)
    return h @ params["w2"] + params["b2"]


# --------------------------------- main --------------------------------------
if __name__ == "__main__":
    latent_size = 29          # latent_size + xyz(3) = 32 input features
    init_dims = [32, 32]      # dims_init = [32, 32, 32, 3]
    N = 137                   # not a tile multiple: exercises the masked partial
                              # last block (no wrapper-side padding pass)

    key = jax.random.PRNGKey(0)
    key, kparams, kx = jax.random.split(key, 3)
    params = init_deformnet_params(kparams, latent_size, init_dims)

    # input = [latent | xyz] concatenated along feature dim, as in the module.
    x = jax.random.normal(kx, (N, latent_size + 3), jnp.float32)

    ref = deformnet_reference(x, params)

    # Default path: bf16 streaming (f32 accumulation + f32 epilogue).
    out = jax.block_until_ready(deformnet_forward(x, params))
    assert out.shape == (N, 3)
    assert jnp.allclose(out, ref, atol=5e-2, rtol=5e-2)

    # Exact f32 path: tight-tolerance correctness check of the kernel math.
    out_f32 = jax.block_until_ready(
        deformnet_forward(x, params, compute_dtype=jnp.float32))
    assert out_f32.shape == (N, 3)
    assert jnp.allclose(out_f32, ref, atol=1e-5, rtol=1e-5)

    print("KERNEL_OK")
</pallas_src>

<mosaic_0001>
module attributes {stable_mosaic.version = 11 : i64} {
  func.func @deformnet_kernel(%arg0: i32, %arg1: memref<72x32xbf16, #tpu.memory_space<vmem>>, %arg2: memref<32x128xbf16, #tpu.memory_space<vmem>>, %arg3: memref<128x128xbf16, #tpu.memory_space<vmem>>, %arg4: memref<128x3xbf16, #tpu.memory_space<vmem>>, %arg5: memref<2x128xf32, #tpu.memory_space<vmem>>, %arg6: memref<1x3xf32, #tpu.memory_space<vmem>>, %arg7: memref<72x3xf32, #tpu.memory_space<vmem>>) attributes {dimension_semantics = [#tpu.dimension_semantics<parallel>], iteration_bounds = array<i64: 2>, scalar_prefetch = 0 : i64, scratch_operands = 0 : i64, tpu.core_type = #tpu.core_type<tc>, window_params = [{transform_indices = @transform_0, window_bounds = array<i64: 72, 32>}, {pipeline_mode = #tpu.pipeline_mode<synchronous>, transform_indices = @transform_1, window_bounds = array<i64: 32, 128>}, {pipeline_mode = #tpu.pipeline_mode<synchronous>, transform_indices = @transform_2, window_bounds = array<i64: 128, 128>}, {pipeline_mode = #tpu.pipeline_mode<synchronous>, transform_indices = @transform_3, window_bounds = array<i64: 128, 3>}, {pipeline_mode = #tpu.pipeline_mode<synchronous>, transform_indices = @transform_4, window_bounds = array<i64: 2, 128>}, {pipeline_mode = #tpu.pipeline_mode<synchronous>, transform_indices = @transform_5, window_bounds = array<i64: 1, 3>}, {transform_indices = @transform_6, window_bounds = array<i64: 72, 3>}]} {
    %c0 = arith.constant 0 : index
    %c0_0 = arith.constant 0 : index
    %0 = vector.load %arg1[%c0, %c0_0] : memref<72x32xbf16, #tpu.memory_space<vmem>>, vector<72x32xbf16>
    %c0_1 = arith.constant 0 : index
    %c0_2 = arith.constant 0 : index
    %1 = vector.load %arg2[%c0_1, %c0_2] : memref<32x128xbf16, #tpu.memory_space<vmem>>, vector<32x128xbf16>
    %cst = arith.constant dense<0.000000e+00> : vector<72x128xf32>
    %2 = tpu.matmul %0, %1, %cst {dimension_numbers = #tpu.dot_dimension_numbers<[1], [0], [0], [1], [0, 0, 1, 1], [], []>} : vector<72x32xbf16>, vector<32x128xbf16>, vector<72x128xf32> -> vector<72x128xf32>
    %c0_3 = arith.constant 0 : index
    %c0_4 = arith.constant 0 : index
    %3 = vector.load %arg5[%c0_3, %c0_4] : memref<2x128xf32, #tpu.memory_space<vmem>>, vector<1x128xf32>
    %4 = vector.broadcast %3 : vector<1x128xf32> to vector<72x128xf32>
    %5 = arith.addf %2, %4 : vector<72x128xf32>
    %cst_5 = arith.constant 0.000000e+00 : f32
    %6 = vector.broadcast %cst_5 : f32 to vector<72x128xf32>
    %7 = arith.maximumf %5, %6 : vector<72x128xf32>
    %8 = arith.truncf %7 : vector<72x128xf32> to vector<72x128xbf16>
    %c0_6 = arith.constant 0 : index
    %c0_7 = arith.constant 0 : index
    %9 = vector.load %arg3[%c0_6, %c0_7] : memref<128x128xbf16, #tpu.memory_space<vmem>>, vector<128x128xbf16>
    %cst_8 = arith.constant dense<0.000000e+00> : vector<72x128xf32>
    %10 = tpu.matmul %8, %9, %cst_8 {dimension_numbers = #tpu.dot_dimension_numbers<[1], [0], [0], [1], [0, 0, 1, 1], [], []>} : vector<72x128xbf16>, vector<128x128xbf16>, vector<72x128xf32> -> vector<72x128xf32>
    %c1 = arith.constant 1 : index
    %c0_9 = arith.constant 0 : index
    %11 = vector.load %arg5[%c1, %c0_9] : memref<2x128xf32, #tpu.memory_space<vmem>>, vector<1x128xf32>
    %12 = vector.broadcast %11 : vector<1x128xf32> to vector<72x128xf32>
    %13 = arith.addf %10, %12 : vector<72x128xf32>
    %cst_10 = arith.constant 0.000000e+00 : f32
    %14 = vector.broadcast %cst_10 : f32 to vector<72x128xf32>
    %15 = arith.maximumf %13, %14 : vector<72x128xf32>
    %16 = arith.truncf %15 : vector<72x128xf32> to vector<72x128xbf16>
    %c0_11 = arith.constant 0 : index
    %c0_12 = arith.constant 0 : index
    %17 = vector.load %arg4[%c0_11, %c0_12] : memref<128x3xbf16, #tpu.memory_space<vmem>>, vector<128x3xbf16>
    %cst_13 = arith.constant dense<0.000000e+00> : vector<72x3xf32>
    %18 = tpu.matmul %16, %17, %cst_13 {dimension_numbers = #tpu.dot_dimension_numbers<[1], [0], [0], [1], [0, 0, 1, 1], [], []>} : vector<72x128xbf16>, vector<128x3xbf16>, vector<72x3xf32> -> vector<72x3xf32>
    %c0_14 = arith.constant 0 : index
    %c0_15 = arith.constant 0 : index
    %19 = vector.load %arg6[%c0_14, %c0_15] : memref<1x3xf32, #tpu.memory_space<vmem>>, vector<1x3xf32>
    %20 = vector.broadcast %19 : vector<1x3xf32> to vector<72x3xf32>
    %21 = arith.addf %18, %20 : vector<72x3xf32>
    %c0_16 = arith.constant 0 : index
    %c0_17 = arith.constant 0 : index
    %22 = vector.load %arg7[%c0_16, %c0_17] : memref<72x3xf32, #tpu.memory_space<vmem>>, vector<72x3xf32>
    tpu.vector_store %arg7[%c0_16, %c0_17], %21 {strides = array<i32>} : memref<72x3xf32, #tpu.memory_space<vmem>>, vector<72x3xf32>,
    return
  }
  func.func @transform_0(%arg0: i32) -> (i32, i32) {
    %c0_i32 = arith.constant 0 : i32
    %c0_i32_0 = arith.constant 0 : i32
    return %arg0, %c0_i32 : i32, i32
  }
  func.func @transform_1(%arg0: i32) -> (i32, i32) {
    %c0_i32 = arith.constant 0 : i32
    %c0_i32_0 = arith.constant 0 : i32
    %c0_i32_1 = arith.constant 0 : i32
    return %c0_i32, %c0_i32_0 : i32, i32
  }
  func.func @transform_2(%arg0: i32) -> (i32, i32) {
    %c0_i32 = arith.constant 0 : i32
    %c0_i32_0 = arith.constant 0 : i32
    %c0_i32_1 = arith.constant 0 : i32
    return %c0_i32, %c0_i32_0 : i32, i32
  }
  func.func @transform_3(%arg0: i32) -> (i32, i32) {
    %c0_i32 = arith.constant 0 : i32
    %c0_i32_0 = arith.constant 0 : i32
    %c0_i32_1 = arith.constant 0 : i32
    return %c0_i32, %c0_i32_0 : i32, i32
  }
  func.func @transform_4(%arg0: i32) -> (i32, i32) {
    %c0_i32 = arith.constant 0 : i32
    %c0_i32_0 = arith.constant 0 : i32
    %c0_i32_1 = arith.constant 0 : i32
    return %c0_i32, %c0_i32_0 : i32, i32
  }
  func.func @transform_5(%arg0: i32) -> (i32, i32) {
    %c0_i32 = arith.constant 0 : i32
    %c0_i32_0 = arith.constant 0 : i32
    %c0_i32_1 = arith.constant 0 : i32
    return %c0_i32, %c0_i32_0 : i32, i32
  }
  func.func @transform_6(%arg0: i32) -> (i32, i32) {
    %c0_i32 = arith.constant 0 : i32
    %c0_i32_0 = arith.constant 0 : i32
    return %arg0, %c0_i32 : i32, i32
  }
}

module attributes {stable_mosaic.version = 11 : i64} {
  func.func @deformnet_kernel(%arg0: i32, %arg1: memref<72x32xbf16, #tpu.memory_space<vmem>>, %arg2: memref<32x128xbf16, #tpu.memory_space<vmem>>, %arg3: memref<128x128xbf16, #tpu.memory_space<vmem>>, %arg4: memref<128x3xbf16, #tpu.memory_space<vmem>>, %arg5: memref<2x128xf32, #tpu.memory_space<vmem>>, %arg6: memref<1x3xf32, #tpu.memory_space<vmem>>, %arg7: memref<72x3xf32, #tpu.memory_space<vmem>>) attributes {dimension_semantics = [#tpu.dimension_semantics<parallel>], iteration_bounds = array<i64: 2>, scalar_prefetch = 0 : i64, scratch_operands = 0 : i64, tpu.core_type = #tpu.core_type<tc>, window_params = [{transform_indices = @transform_0, window_bounds = array<i64: 72, 32>}, {pipeline_mode = #tpu.pipeline_mode<synchronous>, transform_indices = @transform_1, window_bounds = array<i64: 32, 128>}, {pipeline_mode = #tpu.pipeline_mode<synchronous>, transform_indices = @transform_2, window_bounds = array<i64: 128, 128>}, {pipeline_mode = #tpu.pipeline_mode<synchronous>, transform_indices = @transform_3, window_bounds = array<i64: 128, 3>}, {pipeline_mode = #tpu.pipeline_mode<synchronous>, transform_indices = @transform_4, window_bounds = array<i64: 2, 128>}, {pipeline_mode = #tpu.pipeline_mode<synchronous>, transform_indices = @transform_5, window_bounds = array<i64: 1, 3>}, {transform_indices = @transform_6, window_bounds = array<i64: 72, 3>}]} {
    %c0 = arith.constant 0 : index
    %c0_0 = arith.constant 0 : index
    %0 = vector.load %arg1[%c0, %c0_0] : memref<72x32xbf16, #tpu.memory_space<vmem>>, vector<72x32xbf16>
    %c0_1 = arith.constant 0 : index
    %c0_2 = arith.constant 0 : index
    %1 = vector.load %arg2[%c0_1, %c0_2] : memref<32x128xbf16, #tpu.memory_space<vmem>>, vector<32x128xbf16>
    %cst = arith.constant dense<0.000000e+00> : vector<72x128xf32>
    %2 = tpu.matmul %0, %1, %cst {dimension_numbers = #tpu.dot_dimension_numbers<[1], [0], [0], [1], [0, 0, 1, 1], [], []>} : vector<72x32xbf16>, vector<32x128xbf16>, vector<72x128xf32> -> vector<72x128xf32>
    %c0_3 = arith.constant 0 : index
    %c0_4 = arith.constant 0 : index
    %3 = vector.load %arg5[%c0_3, %c0_4] : memref<2x128xf32, #tpu.memory_space<vmem>>, vector<1x128xf32>
    %4 = vector.broadcast %3 : vector<1x128xf32> to vector<72x128xf32>
    %5 = arith.addf %2, %4 : vector<72x128xf32>
    %cst_5 = arith.constant 0.000000e+00 : f32
    %6 = vector.broadcast %cst_5 : f32 to vector<72x128xf32>
    %7 = arith.maximumf %5, %6 : vector<72x128xf32>
    %8 = arith.truncf %7 : vector<72x128xf32> to vector<72x128xbf16>
    %c0_6 = arith.constant 0 : index
    %c0_7 = arith.constant 0 : index
    %9 = vector.load %arg3[%c0_6, %c0_7] : memref<128x128xbf16, #tpu.memory_space<vmem>>, vector<128x128xbf16>
    %cst_8 = arith.constant dense<0.000000e+00> : vector<72x128xf32>
    %10 = tpu.matmul %8, %9, %cst_8 {dimension_numbers = #tpu.dot_dimension_numbers<[1], [0], [0], [1], [0, 0, 1, 1], [], []>} : vector<72x128xbf16>, vector<128x128xbf16>, vector<72x128xf32> -> vector<72x128xf32>
    %c1 = arith.constant 1 : index
    %c0_9 = arith.constant 0 : index
    %11 = vector.load %arg5[%c1, %c0_9] : memref<2x128xf32, #tpu.memory_space<vmem>>, vector<1x128xf32>
    %12 = vector.broadcast %11 : vector<1x128xf32> to vector<72x128xf32>
    %13 = arith.addf %10, %12 : vector<72x128xf32>
    %cst_10 = arith.constant 0.000000e+00 : f32
    %14 = vector.broadcast %cst_10 : f32 to vector<72x128xf32>
    %15 = arith.maximumf %13, %14 : vector<72x128xf32>
    %16 = arith.truncf %15 : vector<72x128xf32> to vector<72x128xbf16>
    %c0_11 = arith.constant 0 : index
    %c0_12 = arith.constant 0 : index
    %17 = vector.load %arg4[%c0_11, %c0_12] : memref<128x3xbf16, #tpu.memory_space<vmem>>, vector<128x3xbf16>
    %cst_13 = arith.constant dense<0.000000e+00> : vector<72x3xf32>
    %18 = tpu.matmul %16, %17, %cst_13 {dimension_numbers = #tpu.dot_dimension_numbers<[1], [0], [0], [1], [0, 0, 1, 1], [], []>} : vector<72x128xbf16>, vector<128x3xbf16>, vector<72x3xf32> -> vector<72x3xf32>
    %c0_14 = arith.constant 0 : index
    %c0_15 = arith.constant 0 : index
    %19 = vector.load %arg6[%c0_14, %c0_15] : memref<1x3xf32, #tpu.memory_space<vmem>>, vector<1x3xf32>
    %20 = vector.broadcast %19 : vector<1x3xf32> to vector<72x3xf32>
    %21 = arith.addf %18, %20 : vector<72x3xf32>
    %c0_16 = arith.constant 0 : index
    %c0_17 = arith.constant 0 : index
    %22 = vector.load %arg7[%c0_16, %c0_17] : memref<72x3xf32, #tpu.memory_space<vmem>>, vector<72x3xf32>
    tpu.vector_store %arg7[%c0_16, %c0_17], %21 {strides = array<i32>} : memref<72x3xf32, #tpu.memory_space<vmem>>, vector<72x3xf32>,
    return
  }
  func.func @transform_0(%arg0: i32) -> (i32, i32) {
    %c0_i32 = arith.constant 0 : i32
    %c0_i32_0 = arith.constant 0 : i32
    return %arg0, %c0_i32 : i32, i32
  }
  func.func @transform_1(%arg0: i32) -> (i32, i32) {
    %c0_i32 = arith.constant 0 : i32
    %c0_i32_0 = arith.constant 0 : i32
    %c0_i32_1 = arith.constant 0 : i32
    return %c0_i32, %c0_i32_0 : i32, i32
  }
  func.func @transform_2(%arg0: i32) -> (i32, i32) {
    %c0_i32 = arith.constant 0 : i32
    %c0_i32_0 = arith.constant 0 : i32
    %c0_i32_1 = arith.constant 0 : i32
    return %c0_i32, %c0_i32_0 : i32, i32
  }
  func.func @transform_3(%arg0: i32) -> (i32, i32) {
    %c0_i32 = arith.constant 0 : i32
    %c0_i32_0 = arith.constant 0 : i32
    %c0_i32_1 = arith.constant 0 : i32
    return %c0_i32, %c0_i32_0 : i32, i32
  }
  func.func @transform_4(%arg0: i32) -> (i32, i32) {
    %c0_i32 = arith.constant 0 : i32
    %c0_i32_0 = arith.constant 0 : i32
    %c0_i32_1 = arith.constant 0 : i32
    return %c0_i32, %c0_i32_0 : i32, i32
  }
  func.func @transform_5(%arg0: i32) -> (i32, i32) {
    %c0_i32 = arith.constant 0 : i32
    %c0_i32_0 = arith.constant 0 : i32
    %c0_i32_1 = arith.constant 0 : i32
    return %c0_i32, %c0_i32_0 : i32, i32
  }
  func.func @transform_6(%arg0: i32) -> (i32, i32) {
    %c0_i32 = arith.constant 0 : i32
    %c0_i32_0 = arith.constant 0 : i32
    return %arg0, %c0_i32 : i32, i32
  }
}

</mosaic_0001>

<llo_original>
// kernel: tpu_custom_call.1
$region0: #{tpu_custom_call.1}
  #allocation0 [shape = 'u32[]', space=smem, size = 0x4, offset = 0x4, fixed_abs, tag = 'smem constant byte address 0x4 - core index']
  #allocation1 [shape = 'u32[144,128]{1,0:T(1,128)}', space=vmem, size = 0x12000, scoped, tag = 'internal scratch']
  %s0 = inlined_call_operand.vmem [shape: bf16[137,32], index: 0, kind: input, shape index: {}]
  %s1 = inlined_call_operand.vmem [shape: bf16[32,128], index: 1, kind: input, shape index: {}]
  %s2 = inlined_call_operand.vmem [shape: bf16[128,128], index: 2, kind: input, shape index: {}]
  %s3 = inlined_call_operand.vmem [shape: bf16[128,3], index: 3, kind: input, shape index: {}]
  %s4 = inlined_call_operand.vmem [shape: f32[2,128], index: 4, kind: input, shape index: {}]
  %s5 = inlined_call_operand.vmem [shape: f32[1,3], index: 5, kind: input, shape index: {}]
  %s6 = inlined_call_operand.vmem [shape: f32[137,3], index: 6, kind: output, shape index: {}]
  %s7 = sld [smem:[#allocation0]]
  $region57: #{tpu_custom_call.1} parent=0
    _
  %s9 = ssub.s32 1, %s7
  %s10 = scalar_select 0, %s9, %s7
  loop: start=0, step=1, limit=4
  $region2: #{tpu_custom_call.1} parent=0 // loop_pre_header
    _
  $region3: #{tpu_custom_call.1} parent=0 // loop_header
    %s12 = sphi 0, %s16
    %p13 = scmp.ge.s32.totalorder %s12, 4
    %s22 = sphi 0, %s24
    %s25 = sphi 0, %s22
    %s26 = sphi 0, %s25
    %s42 = sphi 0, %s26
    %s46 = sphi 0, %s46
    %s48 = sphi 0, %s46
    %s49 = sphi 0, %s48
    %s63 = sphi 0, %s49
    %s67 = sphi 0, %s67
    %s69 = sphi 0, %s67
    %s70 = sphi 0, %s69
    %s84 = sphi 0, %s70
    %s88 = sphi 0, %s88
    %s90 = sphi 0, %s88
    %s91 = sphi 0, %s90
    %s105 = sphi 0, %s91
    %s109 = sphi 0, %s109
    %s111 = sphi 0, %s109
    %s112 = sphi 0, %s111
    %s126 = sphi 0, %s112
    %s130 = sphi 0, %s130
    %s132 = sphi 0, %s130
    %s133 = sphi 0, %s132
    %s147 = sphi 0, %s133
    %s153 = sphi 0, %s155
    %s156 = sphi 0, %s153
    %s157 = sphi 0, %s156
    %s173 = sphi 0, %s157
  $region4: #{tpu_custom_call.1} parent=0 // loop_header_branch
    %15 = sbr.rel (%p13) target = $region8
  $region5: #{tpu_custom_call.1} parent=0 // loop_body
    %s17 = ssub.s32 %s12, 1
    %s18 = ssub.s32 %s12, 2
    %s19 = sadd.s32 %s12, 1
    %s20 = ssub.s32 %s12, %s19
    %p21 = scmp.eq.s32.totalorder %s20, 0
    %s23 = sadd.s32 %s22, 1
    %s24 = scalar_select %p21, %s22, %s23
    %p27 = pneg %p21
    %p28 = scmp.eq.s32.totalorder %s12, 1
    %p29 = por %p27, %p28
    %p30 = scmp.ne.s32.totalorder %s22, %s25
    %p31 = scmp.eq.s32.totalorder %s12, 0
    %p32 = por %p30, %p31
    %p33 = scmp.ne.s32.totalorder %s22, %s25
    %p34 = scmp.eq.s32.totalorder %s17, 1
    %p35 = por %p33, %p34
    %p36 = scmp.ne.s32.totalorder %s25, %s26
    %p37 = scmp.eq.s32.totalorder %s17, 0
    %p38 = por %p36, %p37
    %p39 = scmp.ne.s32.totalorder %s25, %s26
    %p40 = scmp.eq.s32.totalorder %s18, 1
    %p41 = por %p39, %p40
    %p43 = scmp.ne.s32.totalorder %s26, %s42
    %p44 = scmp.eq.s32.totalorder %s18, 0
    %p45 = por %p43, %p44
    %s47 = sadd.s32 %s46, 1
    %p50 = scmp.eq.s32.totalorder %s12, 1
    %p51 = scmp.ne.s32.totalorder %s46, %s48
    %p52 = scmp.eq.s32.totalorder %s12, 0
    %p53 = por %p51, %p52
    %p54 = scmp.ne.s32.totalorder %s46, %s48
    %p55 = scmp.eq.s32.totalorder %s17, 1
    %p56 = por %p54, %p55
    %p57 = scmp.ne.s32.totalorder %s48, %s49
    %p58 = scmp.eq.s32.totalorder %s17, 0
    %p59 = por %p57, %p58
    %p60 = scmp.ne.s32.totalorder %s48, %s49
    %p61 = scmp.eq.s32.totalorder %s18, 1
    %p62 = por %p60, %p61
    %p64 = scmp.ne.s32.totalorder %s49, %s63
    %p65 = scmp.eq.s32.totalorder %s18, 0
    %p66 = por %p64, %p65
    %s68 = sadd.s32 %s67, 1
    %p71 = scmp.eq.s32.totalorder %s12, 1
    %p72 = scmp.ne.s32.totalorder %s67, %s69
    %p73 = scmp.eq.s32.totalorder %s12, 0
    %p74 = por %p72, %p73
    %p75 = scmp.ne.s32.totalorder %s67, %s69
    %p76 = scmp.eq.s32.totalorder %s17, 1
    %p77 = por %p75, %p76
    %p78 = scmp.ne.s32.totalorder %s69, %s70
    %p79 = scmp.eq.s32.totalorder %s17, 0
    %p80 = por %p78, %p79
    %p81 = scmp.ne.s32.totalorder %s69, %s70
    %p82 = scmp.eq.s32.totalorder %s18, 1
    %p83 = por %p81, %p82
    %p85 = scmp.ne.s32.totalorder %s70, %s84
    %p86 = scmp.eq.s32.totalorder %s18, 0
    %p87 = por %p85, %p86
    %s89 = sadd.s32 %s88, 1
    %p92 = scmp.eq.s32.totalorder %s12, 1
    %p93 = scmp.ne.s32.totalorder %s88, %s90
    %p94 = scmp.eq.s32.totalorder %s12, 0
    %p95 = por %p93, %p94
    %p96 = scmp.ne.s32.totalorder %s88, %s90
    %p97 = scmp.eq.s32.totalorder %s17, 1
    %p98 = por %p96, %p97
    %p99 = scmp.ne.s32.totalorder %s90, %s91
    %p100 = scmp.eq.s32.totalorder %s17, 0
    %p101 = por %p99, %p100
    %p102 = scmp.ne.s32.totalorder %s90, %s91
    %p103 = scmp.eq.s32.totalorder %s18, 1
    %p104 = por %p102, %p103
    %p106 = scmp.ne.s32.totalorder %s91, %s105
    %p107 = scmp.eq.s32.totalorder %s18, 0
    %p108 = por %p106, %p107
    %s110 = sadd.s32 %s109, 1
    %p113 = scmp.eq.s32.totalorder %s12, 1
    %p114 = scmp.ne.s32.totalorder %s109, %s111
    %p115 = scmp.eq.s32.totalorder %s12, 0
    %p116 = por %p114, %p115
    %p117 = scmp.ne.s32.totalorder %s109, %s111
    %p118 = scmp.eq.s32.totalorder %s17, 1
    %p119 = por %p117, %p118
    %p120 = scmp.ne.s32.totalorder %s111, %s112
    %p121 = scmp.eq.s32.totalorder %s17, 0
    %p122 = por %p120, %p121
    %p123 = scmp.ne.s32.totalorder %s111, %s112
    %p124 = scmp.eq.s32.totalorder %s18, 1
    %p125 = por %p123, %p124
    %p127 = scmp.ne.s32.totalorder %s112, %s126
    %p128 = scmp.eq.s32.totalorder %s18, 0
    %p129 = por %p127, %p128
    %s131 = sadd.s32 %s130, 1
    %p134 = scmp.eq.s32.totalorder %s12, 1
    %p135 = scmp.ne.s32.totalorder %s130, %s132
    %p136 = scmp.eq.s32.totalorder %s12, 0
    %p137 = por %p135, %p136
    %p138 = scmp.ne.s32.totalorder %s130, %s132
    %p139 = scmp.eq.s32.totalorder %s17, 1
    %p140 = por %p138, %p139
    %p141 = scmp.ne.s32.totalorder %s132, %s133
    %p142 = scmp.eq.s32.totalorder %s17, 0
    %p143 = por %p141, %p142
    %p144 = scmp.ne.s32.totalorder %s132, %s133
    %p145 = scmp.eq.s32.totalorder %s18, 1
    %p146 = por %p144, %p145
    %p148 = scmp.ne.s32.totalorder %s133, %s147
    %p149 = scmp.eq.s32.totalorder %s18, 0
    %p150 = por %p148, %p149
    %s151 = ssub.s32 %s12, %s19
    %p152 = scmp.eq.s32.totalorder %s151, 0
    %s154 = sadd.s32 %s153, 1
    %s155 = scalar_select %p152, %s153, %s154
    %p158 = pneg %p152
    %p159 = scmp.eq.s32.totalorder %s12, 1
    %p160 = por %p158, %p159
    %p161 = scmp.ne.s32.totalorder %s153, %s156
    %p162 = scmp.eq.s32.totalorder %s12, 0
    %p163 = por %p161, %p162
    %p164 = scmp.ne.s32.totalorder %s153, %s156
    %p165 = scmp.eq.s32.totalorder %s17, 1
    %p166 = por %p164, %p165
    %p167 = scmp.ne.s32.totalorder %s156, %s157
    %p168 = scmp.eq.s32.totalorder %s17, 0
    %p169 = por %p167, %p168
    %p170 = scmp.ne.s32.totalorder %s156, %s157
    %p171 = scmp.eq.s32.totalorder %s18, 1
    %p172 = por %p170, %p171
    %p174 = scmp.ne.s32.totalorder %s157, %s173
    %p175 = scmp.eq.s32.totalorder %s18, 0
    %p176 = por %p174, %p175
    %p177 = scmp.le.s32.totalorder 1, %s12
    %p178 = scmp.lt.s32.totalorder %s12, 3
    %p179 = pnand %p177, %p178
    %p180 = pneg %p179
    // Predicated region
    $region9: #{tpu_custom_call.1} parent=5 // pred_check
      _
    $region10: #{tpu_custom_call.1} parent=5 // pred_check_branch
      %182 = sbr.rel (%p179) target = $region12
    $region11: #{tpu_custom_call.1} parent=5 // pred_region
      %s183 = ssub.s32 %s12, 1
      // Predicated region
      $region13: #{tpu_custom_call.1} parent=11 // pred_check
        %p184 = pneg %p59
      $region14: #{tpu_custom_call.1} parent=11 // pred_check_branch
        %186 = sbr.rel (%p184) target = $region16
      $region15: #{tpu_custom_call.1} parent=11 // pred_region
        _
      $region16: #{tpu_custom_call.1} parent=11 // pred_fallthru
        _
      // Predicated region
      $region17: #{tpu_custom_call.1} parent=11 // pred_check
        %p187 = pneg %p80
      $region18: #{tpu_custom_call.1} parent=11 // pred_check_branch
        %189 = sbr.rel (%p187) target = $region20
      $region19: #{tpu_custom_call.1} parent=11 // pred_region
        _
      $region20: #{tpu_custom_call.1} parent=11 // pred_fallthru
        _
      // Predicated region
      $region21: #{tpu_custom_call.1} parent=11 // pred_check
        %p190 = pneg %p101
      $region22: #{tpu_custom_call.1} parent=11 // pred_check_branch
        %192 = sbr.rel (%p190) target = $region24
      $region23: #{tpu_custom_call.1} parent=11 // pred_region
        _
      $region24: #{tpu_custom_call.1} parent=11 // pred_fallthru
        _
      // Predicated region
      $region25: #{tpu_custom_call.1} parent=11 // pred_check
        %p193 = pneg %p122
      $region26: #{tpu_custom_call.1} parent=11 // pred_check_branch
        %195 = sbr.rel (%p193) target = $region28
      $region27: #{tpu_custom_call.1} parent=11 // pred_region
        _
      $region28: #{tpu_custom_call.1} parent=11 // pred_fallthru
        _
      // Predicated region
      $region29: #{tpu_custom_call.1} parent=11 // pred_check
        %p196 = pneg %p143
      $region30: #{tpu_custom_call.1} parent=11 // pred_check_branch
        %198 = sbr.rel (%p196) target = $region32
      $region31: #{tpu_custom_call.1} parent=11 // pred_region
        _
      $region32: #{tpu_custom_call.1} parent=11 // pred_fallthru
        _
    $region12: #{tpu_custom_call.1} parent=5 // pred_fallthru
      _
    %p199 = scmp.lt.s32.totalorder %s12, 2
    // Predicated region
    $region33: #{tpu_custom_call.1} parent=5 // pred_check
      %p200 = pneg %p199
    $region34: #{tpu_custom_call.1} parent=5 // pred_check_branch
      %202 = sbr.rel (%p200) target = $region36
    $region35: #{tpu_custom_call.1} parent=5 // pred_region
      // Predicated region
      $region37: #{tpu_custom_call.1} parent=35 // pred_check
        %p203 = pneg %p32
      $region38: #{tpu_custom_call.1} parent=35 // pred_check_branch
        %205 = sbr.rel (%p203) target = $region40
      $region39: #{tpu_custom_call.1} parent=35 // pred_region
        %s206 = smul.u32 9, %s12
        %p207 = scmp.lt.s32.totalorder %s206, 17
        %s208 = scalar_select %p207, %s206, 17
        %s209 = smul.addr %s208, 4
        %s210 = scalar_lea.vmem %s0, %s209
        %s211 = smul.u32 9, %s12
      $region40: #{tpu_custom_call.1} parent=35 // pred_fallthru
        _
    $region36: #{tpu_custom_call.1} parent=5 // pred_fallthru
      _
    %p212 = scmp.le.s32.totalorder 1, %s12
    %p213 = scmp.lt.s32.totalorder %s12, 3
    %p214 = pnand %p212, %p213
    %p215 = pneg %p214
    // Predicated region
    $region41: #{tpu_custom_call.1} parent=5 // pred_check
      _
    $region42: #{tpu_custom_call.1} parent=5 // pred_check_branch
      %217 = sbr.rel (%p214) target = $region44
    $region43: #{tpu_custom_call.1} parent=5 // pred_region
      %s218 = ssub.s32 %s12, 1
      %s219 = smul.u32 9, %s17
      %p220 = scmp.lt.s32.totalorder %s219, 17
      %s221 = scalar_select %p220, %s219, 17
      %s222 = smul.addr %s221, 4
      %s223 = scalar_lea.vmem %s0, %s222
      %p224 = pneg %p38
      %p225 = pneg %p35
      %p226 = pneg %p59
      %p227 = pneg %p56
      %p228 = pneg %p80
      %p229 = pneg %p77
      %p230 = pneg %p101
      %p231 = pneg %p98
      %p232 = pneg %p122
      %p233 = pneg %p119
      %p234 = pneg %p143
      %p235 = pneg %p140
      %p236 = pneg %p169
      %p237 = pneg %p166
      %s238 = smul.u32 9, %s17
      %p239 = scmp.lt.s32.totalorder %s238, 17
      %s240 = scalar_select %p239, %s238, 17
      %s241 = smul.addr %s240, 8
      %s242 = scalar_lea.vmem %s6, %s241
      %s243 = smul.u32 9, %s17
      %p244 = scmp.lt.s32.totalorder %s243, 17
      %s245 = scalar_select %p244, %s243, 17
      %s246 = smul.addr %s245, 4
      %s247 = scalar_lea.vmem %s0, %s246
      %s248 = smul.u32 9, %s17
      %s249 = smul.u32 9, %s17
      %p250 = scmp.lt.s32.totalorder %s249, 17
      %s251 = scalar_select %p250, %s249, 17
      %s252 = smul.addr %s251, 8
      %s253 = scalar_lea.vmem %s6, %s252
      %s254 = smul.u32 9, %s17
      %v256 = vld [vmem:[%s247] sm:$0xf]
      %v257 = vld [vmem:[%s247 + $0x4] sm:$0xf]
      %v258 = vld [vmem:[%s247 + $0x8] sm:$0xf]
      %v259 = vld [vmem:[%s247 + $0xc] sm:$0xf]
      %v260 = vld [vmem:[%s247 + $0x10] sm:$0xf]
      %v261 = vld [vmem:[%s247 + $0x14] sm:$0xf]
      %v262 = vld [vmem:[%s247 + $0x18] sm:$0xf]
      %v263 = vld [vmem:[%s247 + $0x1c] sm:$0xf]
      %v264 = vld [vmem:[%s247 + $0x20] sm:$0xf]
      %v265 = vld [vmem:[%s1] sm:$0xf]
      %v266 = vld [vmem:[%s1 + $0x4] sm:$0xf]
      %v267 = vld [vmem:[%s1 + $0x8] sm:$0xf]
      %v268 = vld [vmem:[%s1 + $0xc] sm:$0xf]
      %v269 = vld [vmem:[%s4] sm:$0x1]
      %v270 = vlaneseq
      %v271 = vshrl.u32 %v270, 7
      %v272 = vsub.s32 0, %v271
      %v273 = vrot.slane %v269, %v272
      %v283 = vunpack.c.l.b16 %v256
      %v284 = vunpack.c.l.b16 %v257
      %v285 = vunpack.c.l.b16 %v258
      %v286 = vunpack.c.l.b16 %v259
      %v287 = vunpack.c.l.b16 %v260
      %v288 = vunpack.c.l.b16 %v261
      %v289 = vunpack.c.l.b16 %v262
      %v290 = vunpack.c.l.b16 %v263
      %v291 = vunpack.c.l.b16 %v264
      %v292 = vpack.c.b16 %v284, %v283
      %v293 = vpack.c.b16 %v286, %v285
      %v294 = vpack.c.b16 %v288, %v287
      %v295 = vpack.c.b16 %v290, %v289
      %v296 = vpack.c.b16 %v291, %v291
      %v301 = vunpack.c.l.b16 %v265
      %v302 = vunpack.c.l.b16 %v266
      %v303 = vunpack.c.l.b16 %v267
      %v304 = vunpack.c.l.b16 %v268
      %v305 = vpack.c.b16 %v302, %v301
      %v306 = vpack.c.b16 %v304, %v303
      %vm309 = vcmask 261120
      %v311 = vsel %vm309, %v292, 0
      %v314 = vsel %vm309, %v293, 0
      %v317 = vsel %vm309, %v294, 0
      %v320 = vsel %vm309, %v295, 0
      %v323 = vsel %vm309, %v296, 0
      %325 = vmatprep.subr.bf16.mxu0 0
      %326 = vmatpush1.bf16.msra.mxu0 %v305
      %327 = vmatprep.subr.bf16.mxu0 0
      %328 = vmatpush1.bf16.msra.mxu0 %v306
      %329 = vmatprep.subr.bf16.mxu0 0
      %330 = vmatpush1.bf16.msra.mxu0 0
      %331 = vmatprep.subr.bf16.mxu0 0
      %332 = vmatpush1.bf16.msra.mxu0 0
      %333 = vmatprep.subr.bf16.mxu0 0
      %334 = vmatpush1.bf16.msra.mxu0 0
      %335 = vmatprep.subr.bf16.mxu0 0
      %336 = vmatpush1.bf16.msra.mxu0 0
      %337 = vmatprep.subr.bf16.mxu0 0
      %338 = vmatpush1.bf16.msra.mxu0 0
      %339 = vmatprep.subr.bf16.mxu0 0
      %340 = vmatpush1.bf16.msra.mxu0 0
      %341 = vmatprep.subr.bf16.mxu0 0
      %342 = vmatpush1.bf16.msra.mxu0 0
      %343 = vmatprep.subr.bf16.mxu0 0
      %344 = vmatpush1.bf16.msra.mxu0 0
      %345 = vmatprep.subr.bf16.mxu0 0
      %346 = vmatpush1.bf16.msra.mxu0 0
      %347 = vmatprep.subr.bf16.mxu0 0
      %348 = vmatpush1.bf16.msra.mxu0 0
      %349 = vmatprep.subr.bf16.mxu0 0
      %350 = vmatpush1.bf16.msra.mxu0 0
      %351 = vmatprep.subr.bf16.mxu0 0
      %352 = vmatpush1.bf16.msra.mxu0 0
      %353 = vmatprep.subr.bf16.mxu0 0
      %354 = vmatpush1.bf16.msra.mxu0 0
      %355 = vmatprep.subr.bf16.mxu0 0
      %356 = vmatpush1.bf16.msra.mxu0 0
      %357 = vmatprep.mubr.bf16.mxu0 0
      %358 = vmatmul.mubr.bf16.gmra.mrb[0].mxu0 %v311
      %v359 = vpop.f32.mrb[0].mxu0
      %v360 = vadd.f32 %v273, %v359
      %v361 = vpop.f32.mrb[0].mxu0
      %v362 = vpop.f32.mrb[0].mxu0
      %v363 = vadd.f32 %v273, %v362
      %v364 = vpop.f32.mrb[0].mxu0
      %365 = vmatprep.mubr.bf16.mxu0 0
      %366 = vmatmul.mubr.bf16.gmra.mrb[0].mxu0 %v314
      %v367 = vpop.f32.mrb[0].mxu0
      %v368 = vadd.f32 %v273, %v367
      %v369 = vpop.f32.mrb[0].mxu0
      %v370 = vpop.f32.mrb[0].mxu0
      %v371 = vadd.f32 %v273, %v370
      %v372 = vpop.f32.mrb[0].mxu0
      %373 = vmatprep.mubr.bf16.mxu0 0
      %374 = vmatmul.mubr.bf16.gmra.mrb[0].mxu0 %v317
      %v375 = vpop.f32.mrb[0].mxu0
      %v376 = vadd.f32 %v273, %v375
      %v377 = vpop.f32.mrb[0].mxu0
      %v378 = vpop.f32.mrb[0].mxu0
      %v379 = vadd.f32 %v273, %v378
      %v380 = vpop.f32.mrb[0].mxu0
      %381 = vmatprep.mubr.bf16.mxu0 0
      %382 = vmatmul.mubr.bf16.gmra.mrb[0].mxu0 %v320
      %v383 = vpop.f32.mrb[0].mxu0
      %v384 = vadd.f32 %v273, %v383
      %v385 = vpop.f32.mrb[0].mxu0
      %v386 = vpop.f32.mrb[0].mxu0
      %v387 = vadd.f32 %v273, %v386
      %v388 = vpop.f32.mrb[0].mxu0
      %389 = vmatprep.mubr.bf16.mxu0 0
      %390 = vmatmul.mubr.bf16.gmra.mrb[0].mxu0 %v323
      %v391 = vpop.f32.mrb[0].mxu0
      %v392 = vadd.f32 %v273, %v391
      %v393 = vpop.f32.mrb[0].mxu0
      %v394 = vpop.f32.mrb[0].mxu0
      %v395 = vpop.f32.mrb[0].mxu0
      %396 = vdwg.mxu0
      %v397 = vmax.f32 %v360, 0.0
      %v398 = vmax.f32 %v363, 0.0
      %v399 = vmax.f32 %v368, 0.0
      %v400 = vmax.f32 %v371, 0.0
      %v401 = vmax.f32 %v376, 0.0
      %v402 = vmax.f32 %v379, 0.0
      %v403 = vmax.f32 %v384, 0.0
      %v404 = vmax.f32 %v387, 0.0
      %v405 = vmax.f32 %v392, 0.0
      %v406 = vpack.c.bf16 %v398, %v397
      %v407 = vpack.c.bf16 %v400, %v399
      %v408 = vpack.c.bf16 %v402, %v401
      %v409 = vpack.c.bf16 %v404, %v403
      %v410 = vpack.c.bf16 %v405, %v405
      %v411 = vld [vmem:[%s2] sm:$0xf]
      %v412 = vld [vmem:[%s2 + $0x4] sm:$0xf]
      %v413 = vld [vmem:[%s2 + $0x8] sm:$0xf]
      %v414 = vld [vmem:[%s2 + $0xc] sm:$0xf]
      %v415 = vld [vmem:[%s2 + $0x10] sm:$0xf]
      %v416 = vld [vmem:[%s2 + $0x14] sm:$0xf]
      %v417 = vld [vmem:[%s2 + $0x18] sm:$0xf]
      %v418 = vld [vmem:[%s2 + $0x1c] sm:$0xf]
      %v419 = vld [vmem:[%s2 + $0x20] sm:$0xf]
      %v420 = vld [vmem:[%s2 + $0x24] sm:$0xf]
      %v421 = vld [vmem:[%s2 + $0x28] sm:$0xf]
      %v422 = vld [vmem:[%s2 + $0x2c] sm:$0xf]
      %v423 = vld [vmem:[%s2 + $0x30] sm:$0xf]
      %v424 = vld [vmem:[%s2 + $0x34] sm:$0xf]
      %v425 = vld [vmem:[%s2 + $0x38] sm:$0xf]
      %v426 = vld [vmem:[%s2 + $0x3c] sm:$0xf]
      %v427 = vld [vmem:[%s4 + $0x1] sm:$0x1]
      %v428 = vlaneseq
      %v429 = vshrl.u32 %v428, 7
      %v430 = vsub.s32 0, %v429
      %v431 = vrot.slane %v427, %v430
      %v448 = vunpack.c.l.b16 %v411
      %v449 = vunpack.c.l.b16 %v412
      %v450 = vunpack.c.l.b16 %v413
      %v451 = vunpack.c.l.b16 %v414
      %v452 = vunpack.c.l.b16 %v415
      %v453 = vunpack.c.l.b16 %v416
      %v454 = vunpack.c.l.b16 %v417
      %v455 = vunpack.c.l.b16 %v418
      %v456 = vunpack.c.l.b16 %v419
      %v457 = vunpack.c.l.b16 %v420
      %v458 = vunpack.c.l.b16 %v421
      %v459 = vunpack.c.l.b16 %v422
      %v460 = vunpack.c.l.b16 %v423
      %v461 = vunpack.c.l.b16 %v424
      %v462 = vunpack.c.l.b16 %v425
      %v463 = vunpack.c.l.b16 %v426
      %v464 = vpack.c.b16 %v449, %v448
      %v465 = vpack.c.b16 %v451, %v450
      %v466 = vpack.c.b16 %v453, %v452
      %v467 = vpack.c.b16 %v455, %v454
      %v468 = vpack.c.b16 %v457, %v456
      %v469 = vpack.c.b16 %v459, %v458
      %v470 = vpack.c.b16 %v461, %v460
      %v471 = vpack.c.b16 %v463, %v462
      %480 = vmatprep.subr.bf16.mxu0 0
      %481 = vmatpush1.bf16.msra.mxu0 %v464
      %482 = vmatprep.subr.bf16.mxu0 0
      %483 = vmatpush1.bf16.msra.mxu0 %v465
      %484 = vmatprep.subr.bf16.mxu0 0
      %485 = vmatpush1.bf16.msra.mxu0 %v466
      %486 = vmatprep.subr.bf16.mxu0 0
      %487 = vmatpush1.bf16.msra.mxu0 %v467
      %488 = vmatprep.subr.bf16.mxu0 0
      %489 = vmatpush1.bf16.msra.mxu0 %v468
      %490 = vmatprep.subr.bf16.mxu0 0
      %491 = vmatpush1.bf16.msra.mxu0 %v469
      %492 = vmatprep.subr.bf16.mxu0 0
      %493 = vmatpush1.bf16.msra.mxu0 %v470
      %494 = vmatprep.subr.bf16.mxu0 0
      %495 = vmatpush1.bf16.msra.mxu0 %v471
      %496 = vmatprep.subr.bf16.mxu0 0
      %497 = vmatpush1.bf16.msra.mxu0 0
      %498 = vmatprep.subr.bf16.mxu0 0
      %499 = vmatpush1.bf16.msra.mxu0 0
      %500 = vmatprep.subr.bf16.mxu0 0
      %501 = vmatpush1.bf16.msra.mxu0 0
      %502 = vmatprep.subr.bf16.mxu0 0
      %503 = vmatpush1.bf16.msra.mxu0 0
      %504 = vmatprep.subr.bf16.mxu0 0
      %505 = vmatpush1.bf16.msra.mxu0 0
      %506 = vmatprep.subr.bf16.mxu0 0
      %507 = vmatpush1.bf16.msra.mxu0 0
      %508 = vmatprep.subr.bf16.mxu0 0
      %509 = vmatpush1.bf16.msra.mxu0 0
      %510 = vmatprep.subr.bf16.mxu0 0
      %511 = vmatpush1.bf16.msra.mxu0 0
      %512 = vmatprep.mubr.bf16.mxu0 0
      %513 = vmatmul.mubr.bf16.gmra.mrb[0].mxu0 %v406
      %v514 = vpop.f32.mrb[0].mxu0
      %v515 = vadd.f32 %v431, %v514
      %v516 = vpop.f32.mrb[0].mxu0
      %v517 = vpop.f32.mrb[0].mxu0
      %v518 = vadd.f32 %v431, %v517
      %v519 = vpop.f32.mrb[0].mxu0
      %520 = vmatprep.mubr.bf16.mxu0 0
      %521 = vmatmul.mubr.bf16.gmra.mrb[0].mxu0 %v407
      %v522 = vpop.f32.mrb[0].mxu0
      %v523 = vadd.f32 %v431, %v522
      %v524 = vpop.f32.mrb[0].mxu0
      %v525 = vpop.f32.mrb[0].mxu0
      %v526 = vadd.f32 %v431, %v525
      %v527 = vpop.f32.mrb[0].mxu0
      %528 = vmatprep.mubr.bf16.mxu0 0
      %529 = vmatmul.mubr.bf16.gmra.mrb[0].mxu0 %v408
      %v530 = vpop.f32.mrb[0].mxu0
      %v531 = vadd.f32 %v431, %v530
      %v532 = vpop.f32.mrb[0].mxu0
      %v533 = vpop.f32.mrb[0].mxu0
      %v534 = vadd.f32 %v431, %v533
      %v535 = vpop.f32.mrb[0].mxu0
      %536 = vmatprep.mubr.bf16.mxu0 0
      %537 = vmatmul.mubr.bf16.gmra.mrb[0].mxu0 %v409
      %v538 = vpop.f32.mrb[0].mxu0
      %v539 = vadd.f32 %v431, %v538
      %v540 = vpop.f32.mrb[0].mxu0
      %v541 = vpop.f32.mrb[0].mxu0
      %v542 = vadd.f32 %v431, %v541
      %v543 = vpop.f32.mrb[0].mxu0
      %544 = vmatprep.mubr.bf16.mxu0 0
      %545 = vmatmul.mubr.bf16.gmra.mrb[0].mxu0 %v410
      %v546 = vpop.f32.mrb[0].mxu0
      %v547 = vadd.f32 %v431, %v546
      %v548 = vpop.f32.mrb[0].mxu0
      %v549 = vpop.f32.mrb[0].mxu0
      %v550 = vpop.f32.mrb[0].mxu0
      %551 = vdwg.mxu0
      %v552 = vmax.f32 %v515, 0.0
      %v553 = vmax.f32 %v518, 0.0
      %v554 = vmax.f32 %v523, 0.0
      %v555 = vmax.f32 %v526, 0.0
      %v556 = vmax.f32 %v531, 0.0
      %v557 = vmax.f32 %v534, 0.0
      %v558 = vmax.f32 %v539, 0.0
      %v559 = vmax.f32 %v542, 0.0
      %v560 = vmax.f32 %v547, 0.0
      %v561 = vpack.c.bf16 %v553, %v552
      %v562 = vpack.c.bf16 %v555, %v554
      %v563 = vpack.c.bf16 %v557, %v556
      %v564 = vpack.c.bf16 %v559, %v558
      %v565 = vpack.c.bf16 %v560, %v560
      %v566 = vld [vmem:[%s3] sm:$0xf]
      %v567 = vld [vmem:[%s3 + $0x4] sm:$0xf]
      %v568 = vld [vmem:[%s3 + $0x8] sm:$0xf]
      %v569 = vld [vmem:[%s3 + $0xc] sm:$0xf]
      %v570 = vld [vmem:[%s3 + $0x10] sm:$0xf]
      %v571 = vld [vmem:[%s3 + $0x14] sm:$0xf]
      %v572 = vld [vmem:[%s3 + $0x18] sm:$0xf]
      %v573 = vld [vmem:[%s3 + $0x1c] sm:$0xf]
      %v574 = vld [vmem:[%s3 + $0x20] sm:$0xf]
      %v575 = vld [vmem:[%s3 + $0x24] sm:$0xf]
      %v576 = vld [vmem:[%s3 + $0x28] sm:$0xf]
      %v577 = vld [vmem:[%s3 + $0x2c] sm:$0xf]
      %v578 = vld [vmem:[%s3 + $0x30] sm:$0xf]
      %v579 = vld [vmem:[%s3 + $0x34] sm:$0xf]
      %v580 = vld [vmem:[%s3 + $0x38] sm:$0xf]
      %v581 = vld [vmem:[%s3 + $0x3c] sm:$0xf]
      %v582 = vld [vmem:[%s5] sm:$0x1]
      %v584 = vlaneseq
      %v585 = vshrl.u32 %v584, 7
      %v586 = vsub.s32 0, %v585
      %v587 = vrot.slane %v582, %v586
      %v605 = vunpack.c.l.b16 %v566
      %v606 = vunpack.c.l.b16 %v567
      %v607 = vunpack.c.l.b16 %v568
      %v608 = vunpack.c.l.b16 %v569
      %v609 = vunpack.c.l.b16 %v570
      %v610 = vunpack.c.l.b16 %v571
      %v611 = vunpack.c.l.b16 %v572
      %v612 = vunpack.c.l.b16 %v573
      %v613 = vunpack.c.l.b16 %v574
      %v614 = vunpack.c.l.b16 %v575
      %v615 = vunpack.c.l.b16 %v576
      %v616 = vunpack.c.l.b16 %v577
      %v617 = vunpack.c.l.b16 %v578
      %v618 = vunpack.c.l.b16 %v579
      %v619 = vunpack.c.l.b16 %v580
      %v620 = vunpack.c.l.b16 %v581
      %v621 = vpack.c.b16 %v606, %v605
      %v622 = vpack.c.b16 %v608, %v607
      %v623 = vpack.c.b16 %v610, %v609
      %v624 = vpack.c.b16 %v612, %v611
      %v625 = vpack.c.b16 %v614, %v613
      %v626 = vpack.c.b16 %v616, %v615
      %v627 = vpack.c.b16 %v618, %v617
      %v628 = vpack.c.b16 %v620, %v619
      %637 = vmatprep.subr.bf16.mxu0 0
      %638 = vmatpush1.bf16.msra.mxu0 %v621
      %639 = vmatprep.subr.bf16.mxu0 0
      %640 = vmatpush1.bf16.msra.mxu0 %v622
      %641 = vmatprep.subr.bf16.mxu0 0
      %642 = vmatpush1.bf16.msra.mxu0 %v623
      %643 = vmatprep.subr.bf16.mxu0 0
      %644 = vmatpush1.bf16.msra.mxu0 %v624
      %645 = vmatprep.subr.bf16.mxu0 0
      %646 = vmatpush1.bf16.msra.mxu0 %v625
      %647 = vmatprep.subr.bf16.mxu0 0
      %648 = vmatpush1.bf16.msra.mxu0 %v626
      %649 = vmatprep.subr.bf16.mxu0 0
      %650 = vmatpush1.bf16.msra.mxu0 %v627
      %651 = vmatprep.subr.bf16.mxu0 0
      %652 = vmatpush1.bf16.msra.mxu0 %v628
      %653 = vmatprep.subr.bf16.mxu0 0
      %654 = vmatpush1.bf16.msra.mxu0 0
      %655 = vmatprep.subr.bf16.mxu0 0
      %656 = vmatpush1.bf16.msra.mxu0 0
      %657 = vmatprep.subr.bf16.mxu0 0
      %658 = vmatpush1.bf16.msra.mxu0 0
      %659 = vmatprep.subr.bf16.mxu0 0
      %660 = vmatpush1.bf16.msra.mxu0 0
      %661 = vmatprep.subr.bf16.mxu0 0
      %662 = vmatpush1.bf16.msra.mxu0 0
      %663 = vmatprep.subr.bf16.mxu0 0
      %664 = vmatpush1.bf16.msra.mxu0 0
      %665 = vmatprep.subr.bf16.mxu0 0
      %666 = vmatpush1.bf16.msra.mxu0 0
      %667 = vmatprep.subr.bf16.mxu0 0
      %668 = vmatpush1.bf16.msra.mxu0 0
      %669 = vmatprep.mubr.bf16.mxu0 0
      %670 = vmatmul.mubr.bf16.gmra.mrb[0].mxu0 %v561
      %v671 = vpop.f32.mrb[0].mxu0
      %v672 = vadd.f32 %v587, %v671
      %v673 = vpop.f32.mrb[0].mxu0
      %v674 = vpop.f32.mrb[0].mxu0
      %v675 = vadd.f32 %v587, %v674
      %v676 = vpop.f32.mrb[0].mxu0
      %677 = vmatprep.mubr.bf16.mxu0 0
      %678 = vmatmul.mubr.bf16.gmra.mrb[0].mxu0 %v562
      %v679 = vpop.f32.mrb[0].mxu0
      %v680 = vadd.f32 %v587, %v679
      %v681 = vpop.f32.mrb[0].mxu0
      %v682 = vpop.f32.mrb[0].mxu0
      %v683 = vadd.f32 %v587, %v682
      %v684 = vpop.f32.mrb[0].mxu0
      %685 = vmatprep.mubr.bf16.mxu0 0
      %686 = vmatmul.mubr.bf16.gmra.mrb[0].mxu0 %v563
      %v687 = vpop.f32.mrb[0].mxu0
      %v688 = vadd.f32 %v587, %v687
      %v689 = vpop.f32.mrb[0].mxu0
      %v690 = vpop.f32.mrb[0].mxu0
      %v691 = vadd.f32 %v587, %v690
      %v692 = vpop.f32.mrb[0].mxu0
      %693 = vmatprep.mubr.bf16.mxu0 0
      %694 = vmatmul.mubr.bf16.gmra.mrb[0].mxu0 %v564
      %v695 = vpop.f32.mrb[0].mxu0
      %v696 = vadd.f32 %v587, %v695
      %v697 = vpop.f32.mrb[0].mxu0
      %v698 = vpop.f32.mrb[0].mxu0
      %v699 = vadd.f32 %v587, %v698
      %v700 = vpop.f32.mrb[0].mxu0
      %701 = vmatprep.mubr.bf16.mxu0 0
      %702 = vmatmul.mubr.bf16.gmra.mrb[0].mxu0 %v565
      %v703 = vpop.f32.mrb[0].mxu0
      %v704 = vadd.f32 %v587, %v703
      %v705 = vpop.f32.mrb[0].mxu0
      %v706 = vpop.f32.mrb[0].mxu0
      %v707 = vpop.f32.mrb[0].mxu0
      %708 = vdwg.mxu0
      %vm709 = vcmask 23552
      %710 = vst.msk [vmem:[%s253] sm:$0xff] %vm709, %v672
      %711 = vst.msk [vmem:[%s253 + $0x8] sm:$0xff] %vm709, %v675
      %712 = vst.msk [vmem:[%s253 + $0x10] sm:$0xff] %vm709, %v680
      %713 = vst.msk [vmem:[%s253 + $0x18] sm:$0xff] %vm709, %v683
      %714 = vst.msk [vmem:[%s253 + $0x20] sm:$0xff] %vm709, %v688
      %715 = vst.msk [vmem:[%s253 + $0x28] sm:$0xff] %vm709, %v691
      %716 = vst.msk [vmem:[%s253 + $0x30] sm:$0xff] %vm709, %v696
      %717 = vst.msk [vmem:[%s253 + $0x38] sm:$0xff] %vm709, %v699
      %718 = vst.msk [vmem:[%s253 + $0x40] sm:$0xff] %vm709, %v704
      %s719 = smul.u32 9, %s17
      %p720 = scmp.lt.s32.totalorder %s719, 17
      %s721 = scalar_select %p720, %s719, 17
      %s722 = smul.addr %s721, 8
      %s723 = scalar_lea.vmem %s6, %s722
      // Predicated region
      $region45: #{tpu_custom_call.1} parent=43 // pred_check
        %p724 = pneg %p166
      $region46: #{tpu_custom_call.1} parent=43 // pred_check_branch
        %726 = sbr.rel (%p724) target = $region48
      $region47: #{tpu_custom_call.1} parent=43 // pred_region
        %s727 = smul.u32 9, %s17
      $region48: #{tpu_custom_call.1} parent=43 // pred_fallthru
        _
    $region44: #{tpu_custom_call.1} parent=5 // pred_fallthru
      _
    %p728 = scmp.le.s32.totalorder 2, %s12
    // Predicated region
    $region49: #{tpu_custom_call.1} parent=5 // pred_check
      %p729 = pneg %p728
    $region50: #{tpu_custom_call.1} parent=5 // pred_check_branch
      %731 = sbr.rel (%p729) target = $region52
    $region51: #{tpu_custom_call.1} parent=5 // pred_region
      %s732 = ssub.s32 %s12, 2
      // Predicated region
      $region53: #{tpu_custom_call.1} parent=51 // pred_check
        %p733 = pneg %p172
      $region54: #{tpu_custom_call.1} parent=51 // pred_check_branch
        %735 = sbr.rel (%p733) target = $region56
      $region55: #{tpu_custom_call.1} parent=51 // pred_region
        %s736 = smul.u32 9, %s18
        %p737 = scmp.lt.s32.totalorder %s736, 17
        %s738 = scalar_select %p737, %s736, 17
        %s739 = smul.addr %s738, 8
        %s740 = scalar_lea.vmem %s6, %s739
      $region56: #{tpu_custom_call.1} parent=51 // pred_fallthru
        _
    $region52: #{tpu_custom_call.1} parent=5 // pred_fallthru
      _
  $region6: #{tpu_custom_call.1} parent=0 // loop_footer
    %s16 = sadd.s32 1, %s12
  $region7: #{tpu_custom_call.1} parent=0 // loop_footer_branch
    %11 = sbr.rel target = $region3
  $region8: #{tpu_custom_call.1} parent=0 // loop_exit
    _

// kernel: tpu_custom_call.1
$region0: #{tpu_custom_call.1}
  #allocation0 [shape = 'u32[]', space=smem, size = 0x4, offset = 0x4, fixed_abs, tag = 'smem constant byte address 0x4 - core index']
  #allocation1 [shape = 'u32[144,128]{1,0:T(1,128)}', space=vmem, size = 0x12000, scoped, tag = 'internal scratch']
  %s0 = inlined_call_operand.vmem [shape: bf16[137,32], index: 0, kind: input, shape index: {}]
  %s1 = inlined_call_operand.vmem [shape: bf16[32,128], index: 1, kind: input, shape index: {}]
  %s2 = inlined_call_operand.vmem [shape: bf16[128,128], index: 2, kind: input, shape index: {}]
  %s3 = inlined_call_operand.vmem [shape: bf16[128,3], index: 3, kind: input, shape index: {}]
  %s4 = inlined_call_operand.vmem [shape: f32[2,128], index: 4, kind: input, shape index: {}]
  %s5 = inlined_call_operand.vmem [shape: f32[1,3], index: 5, kind: input, shape index: {}]
  %s6 = inlined_call_operand.vmem [shape: f32[137,3], index: 6, kind: output, shape index: {}]
  %s7 = sld [smem:[#allocation0]]
  $region57: #{tpu_custom_call.1} parent=0
    _
  %s9 = ssub.s32 1, %s7
  %s10 = scalar_select 0, %s9, %s7
  loop: start=0, step=1, limit=4
  $region2: #{tpu_custom_call.1} parent=0 // loop_pre_header
    _
  $region3: #{tpu_custom_call.1} parent=0 // loop_header
    %s12 = sphi 0, %s16
    %p13 = scmp.ge.s32.totalorder %s12, 4
    %s22 = sphi 0, %s24
    %s25 = sphi 0, %s22
    %s26 = sphi 0, %s25
    %s42 = sphi 0, %s26
    %s46 = sphi 0, %s46
    %s48 = sphi 0, %s46
    %s49 = sphi 0, %s48
    %s63 = sphi 0, %s49
    %s67 = sphi 0, %s67
    %s69 = sphi 0, %s67
    %s70 = sphi 0, %s69
    %s84 = sphi 0, %s70
    %s88 = sphi 0, %s88
    %s90 = sphi 0, %s88
    %s91 = sphi 0, %s90
    %s105 = sphi 0, %s91
    %s109 = sphi 0, %s109
    %s111 = sphi 0, %s109
    %s112 = sphi 0, %s111
    %s126 = sphi 0, %s112
    %s130 = sphi 0, %s130
    %s132 = sphi 0, %s130
    %s133 = sphi 0, %s132
    %s147 = sphi 0, %s133
    %s153 = sphi 0, %s155
    %s156 = sphi 0, %s153
    %s157 = sphi 0, %s156
    %s173 = sphi 0, %s157
  $region4: #{tpu_custom_call.1} parent=0 // loop_header_branch
    %15 = sbr.rel (%p13) target = $region8
  $region5: #{tpu_custom_call.1} parent=0 // loop_body
    %s17 = ssub.s32 %s12, 1
    %s18 = ssub.s32 %s12, 2
    %s19 = sadd.s32 %s12, 1
    %s20 = ssub.s32 %s12, %s19
    %p21 = scmp.eq.s32.totalorder %s20, 0
    %s23 = sadd.s32 %s22, 1
    %s24 = scalar_select %p21, %s22, %s23
    %p27 = pneg %p21
    %p28 = scmp.eq.s32.totalorder %s12, 1
    %p29 = por %p27, %p28
    %p30 = scmp.ne.s32.totalorder %s22, %s25
    %p31 = scmp.eq.s32.totalorder %s12, 0
    %p32 = por %p30, %p31
    %p33 = scmp.ne.s32.totalorder %s22, %s25
    %p34 = scmp.eq.s32.totalorder %s17, 1
    %p35 = por %p33, %p34
    %p36 = scmp.ne.s32.totalorder %s25, %s26
    %p37 = scmp.eq.s32.totalorder %s17, 0
    %p38 = por %p36, %p37
    %p39 = scmp.ne.s32.totalorder %s25, %s26
    %p40 = scmp.eq.s32.totalorder %s18, 1
    %p41 = por %p39, %p40
    %p43 = scmp.ne.s32.totalorder %s26, %s42
    %p44 = scmp.eq.s32.totalorder %s18, 0
    %p45 = por %p43, %p44
    %s47 = sadd.s32 %s46, 1
    %p50 = scmp.eq.s32.totalorder %s12, 1
    %p51 = scmp.ne.s32.totalorder %s46, %s48
    %p52 = scmp.eq.s32.totalorder %s12, 0
    %p53 = por %p51, %p52
    %p54 = scmp.ne.s32.totalorder %s46, %s48
    %p55 = scmp.eq.s32.totalorder %s17, 1
    %p56 = por %p54, %p55
    %p57 = scmp.ne.s32.totalorder %s48, %s49
    %p58 = scmp.eq.s32.totalorder %s17, 0
    %p59 = por %p57, %p58
    %p60 = scmp.ne.s32.totalorder %s48, %s49
    %p61 = scmp.eq.s32.totalorder %s18, 1
    %p62 = por %p60, %p61
    %p64 = scmp.ne.s32.totalorder %s49, %s63
    %p65 = scmp.eq.s32.totalorder %s18, 0
    %p66 = por %p64, %p65
    %s68 = sadd.s32 %s67, 1
    %p71 = scmp.eq.s32.totalorder %s12, 1
    %p72 = scmp.ne.s32.totalorder %s67, %s69
    %p73 = scmp.eq.s32.totalorder %s12, 0
    %p74 = por %p72, %p73
    %p75 = scmp.ne.s32.totalorder %s67, %s69
    %p76 = scmp.eq.s32.totalorder %s17, 1
    %p77 = por %p75, %p76
    %p78 = scmp.ne.s32.totalorder %s69, %s70
    %p79 = scmp.eq.s32.totalorder %s17, 0
    %p80 = por %p78, %p79
    %p81 = scmp.ne.s32.totalorder %s69, %s70
    %p82 = scmp.eq.s32.totalorder %s18, 1
    %p83 = por %p81, %p82
    %p85 = scmp.ne.s32.totalorder %s70, %s84
    %p86 = scmp.eq.s32.totalorder %s18, 0
    %p87 = por %p85, %p86
    %s89 = sadd.s32 %s88, 1
    %p92 = scmp.eq.s32.totalorder %s12, 1
    %p93 = scmp.ne.s32.totalorder %s88, %s90
    %p94 = scmp.eq.s32.totalorder %s12, 0
    %p95 = por %p93, %p94
    %p96 = scmp.ne.s32.totalorder %s88, %s90
    %p97 = scmp.eq.s32.totalorder %s17, 1
    %p98 = por %p96, %p97
    %p99 = scmp.ne.s32.totalorder %s90, %s91
    %p100 = scmp.eq.s32.totalorder %s17, 0
    %p101 = por %p99, %p100
    %p102 = scmp.ne.s32.totalorder %s90, %s91
    %p103 = scmp.eq.s32.totalorder %s18, 1
    %p104 = por %p102, %p103
    %p106 = scmp.ne.s32.totalorder %s91, %s105
    %p107 = scmp.eq.s32.totalorder %s18, 0
    %p108 = por %p106, %p107
    %s110 = sadd.s32 %s109, 1
    %p113 = scmp.eq.s32.totalorder %s12, 1
    %p114 = scmp.ne.s32.totalorder %s109, %s111
    %p115 = scmp.eq.s32.totalorder %s12, 0
    %p116 = por %p114, %p115
    %p117 = scmp.ne.s32.totalorder %s109, %s111
    %p118 = scmp.eq.s32.totalorder %s17, 1
    %p119 = por %p117, %p118
    %p120 = scmp.ne.s32.totalorder %s111, %s112
    %p121 = scmp.eq.s32.totalorder %s17, 0
    %p122 = por %p120, %p121
    %p123 = scmp.ne.s32.totalorder %s111, %s112
    %p124 = scmp.eq.s32.totalorder %s18, 1
    %p125 = por %p123, %p124
    %p127 = scmp.ne.s32.totalorder %s112, %s126
    %p128 = scmp.eq.s32.totalorder %s18, 0
    %p129 = por %p127, %p128
    %s131 = sadd.s32 %s130, 1
    %p134 = scmp.eq.s32.totalorder %s12, 1
    %p135 = scmp.ne.s32.totalorder %s130, %s132
    %p136 = scmp.eq.s32.totalorder %s12, 0
    %p137 = por %p135, %p136
    %p138 = scmp.ne.s32.totalorder %s130, %s132
    %p139 = scmp.eq.s32.totalorder %s17, 1
    %p140 = por %p138, %p139
    %p141 = scmp.ne.s32.totalorder %s132, %s133
    %p142 = scmp.eq.s32.totalorder %s17, 0
    %p143 = por %p141, %p142
    %p144 = scmp.ne.s32.totalorder %s132, %s133
    %p145 = scmp.eq.s32.totalorder %s18, 1
    %p146 = por %p144, %p145
    %p148 = scmp.ne.s32.totalorder %s133, %s147
    %p149 = scmp.eq.s32.totalorder %s18, 0
    %p150 = por %p148, %p149
    %s151 = ssub.s32 %s12, %s19
    %p152 = scmp.eq.s32.totalorder %s151, 0
    %s154 = sadd.s32 %s153, 1
    %s155 = scalar_select %p152, %s153, %s154
    %p158 = pneg %p152
    %p159 = scmp.eq.s32.totalorder %s12, 1
    %p160 = por %p158, %p159
    %p161 = scmp.ne.s32.totalorder %s153, %s156
    %p162 = scmp.eq.s32.totalorder %s12, 0
    %p163 = por %p161, %p162
    %p164 = scmp.ne.s32.totalorder %s153, %s156
    %p165 = scmp.eq.s32.totalorder %s17, 1
    %p166 = por %p164, %p165
    %p167 = scmp.ne.s32.totalorder %s156, %s157
    %p168 = scmp.eq.s32.totalorder %s17, 0
    %p169 = por %p167, %p168
    %p170 = scmp.ne.s32.totalorder %s156, %s157
    %p171 = scmp.eq.s32.totalorder %s18, 1
    %p172 = por %p170, %p171
    %p174 = scmp.ne.s32.totalorder %s157, %s173
    %p175 = scmp.eq.s32.totalorder %s18, 0
    %p176 = por %p174, %p175
    %p177 = scmp.le.s32.totalorder 1, %s12
    %p178 = scmp.lt.s32.totalorder %s12, 3
    %p179 = pnand %p177, %p178
    %p180 = pneg %p179
    // Predicated region
    $region9: #{tpu_custom_call.1} parent=5 // pred_check
      _
    $region10: #{tpu_custom_call.1} parent=5 // pred_check_branch
      %182 = sbr.rel (%p179) target = $region12
    $region11: #{tpu_custom_call.1} parent=5 // pred_region
      %s183 = ssub.s32 %s12, 1
      // Predicated region
      $region13: #{tpu_custom_call.1} parent=11 // pred_check
        %p184 = pneg %p59
      $region14: #{tpu_custom_call.1} parent=11 // pred_check_branch
        %186 = sbr.rel (%p184) target = $region16
      $region15: #{tpu_custom_call.1} parent=11 // pred_region
        _
      $region16: #{tpu_custom_call.1} parent=11 // pred_fallthru
        _
      // Predicated region
      $region17: #{tpu_custom_call.1} parent=11 // pred_check
        %p187 = pneg %p80
      $region18: #{tpu_custom_call.1} parent=11 // pred_check_branch
        %189 = sbr.rel (%p187) target = $region20
      $region19: #{tpu_custom_call.1} parent=11 // pred_region
        _
      $region20: #{tpu_custom_call.1} parent=11 // pred_fallthru
        _
      // Predicated region
      $region21: #{tpu_custom_call.1} parent=11 // pred_check
        %p190 = pneg %p101
      $region22: #{tpu_custom_call.1} parent=11 // pred_check_branch
        %192 = sbr.rel (%p190) target = $region24
      $region23: #{tpu_custom_call.1} parent=11 // pred_region
        _
      $region24: #{tpu_custom_call.1} parent=11 // pred_fallthru
        _
      // Predicated region
      $region25: #{tpu_custom_call.1} parent=11 // pred_check
        %p193 = pneg %p122
      $region26: #{tpu_custom_call.1} parent=11 // pred_check_branch
        %195 = sbr.rel (%p193) target = $region28
      $region27: #{tpu_custom_call.1} parent=11 // pred_region
        _
      $region28: #{tpu_custom_call.1} parent=11 // pred_fallthru
        _
      // Predicated region
      $region29: #{tpu_custom_call.1} parent=11 // pred_check
        %p196 = pneg %p143
      $region30: #{tpu_custom_call.1} parent=11 // pred_check_branch
        %198 = sbr.rel (%p196) target = $region32
      $region31: #{tpu_custom_call.1} parent=11 // pred_region
        _
      $region32: #{tpu_custom_call.1} parent=11 // pred_fallthru
        _
    $region12: #{tpu_custom_call.1} parent=5 // pred_fallthru
      _
    %p199 = scmp.lt.s32.totalorder %s12, 2
    // Predicated region
    $region33: #{tpu_custom_call.1} parent=5 // pred_check
      %p200 = pneg %p199
    $region34: #{tpu_custom_call.1} parent=5 // pred_check_branch
      %202 = sbr.rel (%p200) target = $region36
    $region35: #{tpu_custom_call.1} parent=5 // pred_region
      // Predicated region
      $region37: #{tpu_custom_call.1} parent=35 // pred_check
        %p203 = pneg %p32
      $region38: #{tpu_custom_call.1} parent=35 // pred_check_branch
        %205 = sbr.rel (%p203) target = $region40
      $region39: #{tpu_custom_call.1} parent=35 // pred_region
        %s206 = smul.u32 9, %s12
        %p207 = scmp.lt.s32.totalorder %s206, 17
        %s208 = scalar_select %p207, %s206, 17
        %s209 = smul.addr %s208, 4
        %s210 = scalar_lea.vmem %s0, %s209
        %s211 = smul.u32 9, %s12
      $region40: #{tpu_custom_call.1} parent=35 // pred_fallthru
        _
    $region36: #{tpu_custom_call.1} parent=5 // pred_fallthru
      _
    %p212 = scmp.le.s32.totalorder 1, %s12
    %p213 = scmp.lt.s32.totalorder %s12, 3
    %p214 = pnand %p212, %p213
    %p215 = pneg %p214
    // Predicated region
    $region41: #{tpu_custom_call.1} parent=5 // pred_check
      _
    $region42: #{tpu_custom_call.1} parent=5 // pred_check_branch
      %217 = sbr.rel (%p214) target = $region44
    $region43: #{tpu_custom_call.1} parent=5 // pred_region
      %s218 = ssub.s32 %s12, 1
      %s219 = smul.u32 9, %s17
      %p220 = scmp.lt.s32.totalorder %s219, 17
      %s221 = scalar_select %p220, %s219, 17
      %s222 = smul.addr %s221, 4
      %s223 = scalar_lea.vmem %s0, %s222
      %p224 = pneg %p38
      %p225 = pneg %p35
      %p226 = pneg %p59
      %p227 = pneg %p56
      %p228 = pneg %p80
      %p229 = pneg %p77
      %p230 = pneg %p101
      %p231 = pneg %p98
      %p232 = pneg %p122
      %p233 = pneg %p119
      %p234 = pneg %p143
      %p235 = pneg %p140
      %p236 = pneg %p169
      %p237 = pneg %p166
      %s238 = smul.u32 9, %s17
      %p239 = scmp.lt.s32.totalorder %s238, 17
      %s240 = scalar_select %p239, %s238, 17
      %s241 = smul.addr %s240, 8
      %s242 = scalar_lea.vmem %s6, %s241
      %s243 = smul.u32 9, %s17
      %p244 = scmp.lt.s32.totalorder %s243, 17
      %s245 = scalar_select %p244, %s243, 17
      %s246 = smul.addr %s245, 4
      %s247 = scalar_lea.vmem %s0, %s246
      %s248 = smul.u32 9, %s17
      %s249 = smul.u32 9, %s17
      %p250 = scmp.lt.s32.totalorder %s249, 17
      %s251 = scalar_select %p250, %s249, 17
      %s252 = smul.addr %s251, 8
      %s253 = scalar_lea.vmem %s6, %s252
      %s254 = smul.u32 9, %s17
      %v256 = vld [vmem:[%s247] sm:$0xf]
      %v257 = vld [vmem:[%s247 + $0x4] sm:$0xf]
      %v258 = vld [vmem:[%s247 + $0x8] sm:$0xf]
      %v259 = vld [vmem:[%s247 + $0xc] sm:$0xf]
      %v260 = vld [vmem:[%s247 + $0x10] sm:$0xf]
      %v261 = vld [vmem:[%s247 + $0x14] sm:$0xf]
      %v262 = vld [vmem:[%s247 + $0x18] sm:$0xf]
      %v263 = vld [vmem:[%s247 + $0x1c] sm:$0xf]
      %v264 = vld [vmem:[%s247 + $0x20] sm:$0xf]
      %v265 = vld [vmem:[%s1] sm:$0xf]
      %v266 = vld [vmem:[%s1 + $0x4] sm:$0xf]
      %v267 = vld [vmem:[%s1 + $0x8] sm:$0xf]
      %v268 = vld [vmem:[%s1 + $0xc] sm:$0xf]
      %v269 = vld [vmem:[%s4] sm:$0x1]
      %v270 = vlaneseq
      %v271 = vshrl.u32 %v270, 7
      %v272 = vsub.s32 0, %v271
      %v273 = vrot.slane %v269, %v272
      %v283 = vunpack.c.l.b16 %v256
      %v284 = vunpack.c.l.b16 %v257
      %v285 = vunpack.c.l.b16 %v258
      %v286 = vunpack.c.l.b16 %v259
      %v287 = vunpack.c.l.b16 %v260
      %v288 = vunpack.c.l.b16 %v261
      %v289 = vunpack.c.l.b16 %v262
      %v290 = vunpack.c.l.b16 %v263
      %v291 = vunpack.c.l.b16 %v264
      %v292 = vpack.c.b16 %v284, %v283
      %v293 = vpack.c.b16 %v286, %v285
      %v294 = vpack.c.b16 %v288, %v287
      %v295 = vpack.c.b16 %v290, %v289
      %v296 = vpack.c.b16 %v291, %v291
      %v301 = vunpack.c.l.b16 %v265
      %v302 = vunpack.c.l.b16 %v266
      %v303 = vunpack.c.l.b16 %v267
      %v304 = vunpack.c.l.b16 %v268
      %v305 = vpack.c.b16 %v302, %v301
      %v306 = vpack.c.b16 %v304, %v303
      %vm309 = vcmask 261120
      %v311 = vsel %vm309, %v292, 0
      %v314 = vsel %vm309, %v293, 0
      %v317 = vsel %vm309, %v294, 0
      %v320 = vsel %vm309, %v295, 0
      %v323 = vsel %vm309, %v296, 0
      %325 = vmatprep.subr.bf16.mxu0 0
      %326 = vmatpush1.bf16.msra.mxu0 %v305
      %327 = vmatprep.subr.bf16.mxu0 0
      %328 = vmatpush1.bf16.msra.mxu0 %v306
      %329 = vmatprep.subr.bf16.mxu0 0
      %330 = vmatpush1.bf16.msra.mxu0 0
      %331 = vmatprep.subr.bf16.mxu0 0
      %332 = vmatpush1.bf16.msra.mxu0 0
      %333 = vmatprep.subr.bf16.mxu0 0
      %334 = vmatpush1.bf16.msra.mxu0 0
      %335 = vmatprep.subr.bf16.mxu0 0
      %336 = vmatpush1.bf16.msra.mxu0 0
      %337 = vmatprep.subr.bf16.mxu0 0
      %338 = vmatpush1.bf16.msra.mxu0 0
      %339 = vmatprep.subr.bf16.mxu0 0
      %340 = vmatpush1.bf16.msra.mxu0 0
      %341 = vmatprep.subr.bf16.mxu0 0
      %342 = vmatpush1.bf16.msra.mxu0 0
      %343 = vmatprep.subr.bf16.mxu0 0
      %344 = vmatpush1.bf16.msra.mxu0 0
      %345 = vmatprep.subr.bf16.mxu0 0
      %346 = vmatpush1.bf16.msra.mxu0 0
      %347 = vmatprep.subr.bf16.mxu0 0
      %348 = vmatpush1.bf16.msra.mxu0 0
      %349 = vmatprep.subr.bf16.mxu0 0
      %350 = vmatpush1.bf16.msra.mxu0 0
      %351 = vmatprep.subr.bf16.mxu0 0
      %352 = vmatpush1.bf16.msra.mxu0 0
      %353 = vmatprep.subr.bf16.mxu0 0
      %354 = vmatpush1.bf16.msra.mxu0 0
      %355 = vmatprep.subr.bf16.mxu0 0
      %356 = vmatpush1.bf16.msra.mxu0 0
      %357 = vmatprep.mubr.bf16.mxu0 0
      %358 = vmatmul.mubr.bf16.gmra.mrb[0].mxu0 %v311
      %v359 = vpop.f32.mrb[0].mxu0
      %v360 = vadd.f32 %v273, %v359
      %v361 = vpop.f32.mrb[0].mxu0
      %v362 = vpop.f32.mrb[0].mxu0
      %v363 = vadd.f32 %v273, %v362
      %v364 = vpop.f32.mrb[0].mxu0
      %365 = vmatprep.mubr.bf16.mxu0 0
      %366 = vmatmul.mubr.bf16.gmra.mrb[0].mxu0 %v314
      %v367 = vpop.f32.mrb[0].mxu0
      %v368 = vadd.f32 %v273, %v367
      %v369 = vpop.f32.mrb[0].mxu0
      %v370 = vpop.f32.mrb[0].mxu0
      %v371 = vadd.f32 %v273, %v370
      %v372 = vpop.f32.mrb[0].mxu0
      %373 = vmatprep.mubr.bf16.mxu0 0
      %374 = vmatmul.mubr.bf16.gmra.mrb[0].mxu0 %v317
      %v375 = vpop.f32.mrb[0].mxu0
      %v376 = vadd.f32 %v273, %v375
      %v377 = vpop.f32.mrb[0].mxu0
      %v378 = vpop.f32.mrb[0].mxu0
      %v379 = vadd.f32 %v273, %v378
      %v380 = vpop.f32.mrb[0].mxu0
      %381 = vmatprep.mubr.bf16.mxu0 0
      %382 = vmatmul.mubr.bf16.gmra.mrb[0].mxu0 %v320
      %v383 = vpop.f32.mrb[0].mxu0
      %v384 = vadd.f32 %v273, %v383
      %v385 = vpop.f32.mrb[0].mxu0
      %v386 = vpop.f32.mrb[0].mxu0
      %v387 = vadd.f32 %v273, %v386
      %v388 = vpop.f32.mrb[0].mxu0
      %389 = vmatprep.mubr.bf16.mxu0 0
      %390 = vmatmul.mubr.bf16.gmra.mrb[0].mxu0 %v323
      %v391 = vpop.f32.mrb[0].mxu0
      %v392 = vadd.f32 %v273, %v391
      %v393 = vpop.f32.mrb[0].mxu0
      %v394 = vpop.f32.mrb[0].mxu0
      %v395 = vpop.f32.mrb[0].mxu0
      %396 = vdwg.mxu0
      %v397 = vmax.f32 %v360, 0.0
      %v398 = vmax.f32 %v363, 0.0
      %v399 = vmax.f32 %v368, 0.0
      %v400 = vmax.f32 %v371, 0.0
      %v401 = vmax.f32 %v376, 0.0
      %v402 = vmax.f32 %v379, 0.0
      %v403 = vmax.f32 %v384, 0.0
      %v404 = vmax.f32 %v387, 0.0
      %v405 = vmax.f32 %v392, 0.0
      %v406 = vpack.c.bf16 %v398, %v397
      %v407 = vpack.c.bf16 %v400, %v399
      %v408 = vpack.c.bf16 %v402, %v401
      %v409 = vpack.c.bf16 %v404, %v403
      %v410 = vpack.c.bf16 %v405, %v405
      %v411 = vld [vmem:[%s2] sm:$0xf]
      %v412 = vld [vmem:[%s2 + $0x4] sm:$0xf]
      %v413 = vld [vmem:[%s2 + $0x8] sm:$0xf]
      %v414 = vld [vmem:[%s2 + $0xc] sm:$0xf]
      %v415 = vld [vmem:[%s2 + $0x10] sm:$0xf]
      %v416 = vld [vmem:[%s2 + $0x14] sm:$0xf]
      %v417 = vld [vmem:[%s2 + $0x18] sm:$0xf]
      %v418 = vld [vmem:[%s2 + $0x1c] sm:$0xf]
      %v419 = vld [vmem:[%s2 + $0x20] sm:$0xf]
      %v420 = vld [vmem:[%s2 + $0x24] sm:$0xf]
      %v421 = vld [vmem:[%s2 + $0x28] sm:$0xf]
      %v422 = vld [vmem:[%s2 + $0x2c] sm:$0xf]
      %v423 = vld [vmem:[%s2 + $0x30] sm:$0xf]
      %v424 = vld [vmem:[%s2 + $0x34] sm:$0xf]
      %v425 = vld [vmem:[%s2 + $0x38] sm:$0xf]
      %v426 = vld [vmem:[%s2 + $0x3c] sm:$0xf]
      %v427 = vld [vmem:[%s4 + $0x1] sm:$0x1]
      %v428 = vlaneseq
      %v429 = vshrl.u32 %v428, 7
      %v430 = vsub.s32 0, %v429
      %v431 = vrot.slane %v427, %v430
      %v448 = vunpack.c.l.b16 %v411
      %v449 = vunpack.c.l.b16 %v412
      %v450 = vunpack.c.l.b16 %v413
      %v451 = vunpack.c.l.b16 %v414
      %v452 = vunpack.c.l.b16 %v415
      %v453 = vunpack.c.l.b16 %v416
      %v454 = vunpack.c.l.b16 %v417
      %v455 = vunpack.c.l.b16 %v418
      %v456 = vunpack.c.l.b16 %v419
      %v457 = vunpack.c.l.b16 %v420
      %v458 = vunpack.c.l.b16 %v421
      %v459 = vunpack.c.l.b16 %v422
      %v460 = vunpack.c.l.b16 %v423
      %v461 = vunpack.c.l.b16 %v424
      %v462 = vunpack.c.l.b16 %v425
      %v463 = vunpack.c.l.b16 %v426
      %v464 = vpack.c.b16 %v449, %v448
      %v465 = vpack.c.b16 %v451, %v450
      %v466 = vpack.c.b16 %v453, %v452
      %v467 = vpack.c.b16 %v455, %v454
      %v468 = vpack.c.b16 %v457, %v456
      %v469 = vpack.c.b16 %v459, %v458
      %v470 = vpack.c.b16 %v461, %v460
      %v471 = vpack.c.b16 %v463, %v462
      %480 = vmatprep.subr.bf16.mxu0 0
      %481 = vmatpush1.bf16.msra.mxu0 %v464
      %482 = vmatprep.subr.bf16.mxu0 0
      %483 = vmatpush1.bf16.msra.mxu0 %v465
      %484 = vmatprep.subr.bf16.mxu0 0
      %485 = vmatpush1.bf16.msra.mxu0 %v466
      %486 = vmatprep.subr.bf16.mxu0 0
      %487 = vmatpush1.bf16.msra.mxu0 %v467
      %488 = vmatprep.subr.bf16.mxu0 0
      %489 = vmatpush1.bf16.msra.mxu0 %v468
      %490 = vmatprep.subr.bf16.mxu0 0
      %491 = vmatpush1.bf16.msra.mxu0 %v469
      %492 = vmatprep.subr.bf16.mxu0 0
      %493 = vmatpush1.bf16.msra.mxu0 %v470
      %494 = vmatprep.subr.bf16.mxu0 0
      %495 = vmatpush1.bf16.msra.mxu0 %v471
      %496 = vmatprep.subr.bf16.mxu0 0
      %497 = vmatpush1.bf16.msra.mxu0 0
      %498 = vmatprep.subr.bf16.mxu0 0
      %499 = vmatpush1.bf16.msra.mxu0 0
      %500 = vmatprep.subr.bf16.mxu0 0
      %501 = vmatpush1.bf16.msra.mxu0 0
      %502 = vmatprep.subr.bf16.mxu0 0
      %503 = vmatpush1.bf16.msra.mxu0 0
      %504 = vmatprep.subr.bf16.mxu0 0
      %505 = vmatpush1.bf16.msra.mxu0 0
      %506 = vmatprep.subr.bf16.mxu0 0
      %507 = vmatpush1.bf16.msra.mxu0 0
      %508 = vmatprep.subr.bf16.mxu0 0
      %509 = vmatpush1.bf16.msra.mxu0 0
      %510 = vmatprep.subr.bf16.mxu0 0
      %511 = vmatpush1.bf16.msra.mxu0 0
      %512 = vmatprep.mubr.bf16.mxu0 0
      %513 = vmatmul.mubr.bf16.gmra.mrb[0].mxu0 %v406
      %v514 = vpop.f32.mrb[0].mxu0
      %v515 = vadd.f32 %v431, %v514
      %v516 = vpop.f32.mrb[0].mxu0
      %v517 = vpop.f32.mrb[0].mxu0
      %v518 = vadd.f32 %v431, %v517
      %v519 = vpop.f32.mrb[0].mxu0
      %520 = vmatprep.mubr.bf16.mxu0 0
      %521 = vmatmul.mubr.bf16.gmra.mrb[0].mxu0 %v407
      %v522 = vpop.f32.mrb[0].mxu0
      %v523 = vadd.f32 %v431, %v522
      %v524 = vpop.f32.mrb[0].mxu0
      %v525 = vpop.f32.mrb[0].mxu0
      %v526 = vadd.f32 %v431, %v525
      %v527 = vpop.f32.mrb[0].mxu0
      %528 = vmatprep.mubr.bf16.mxu0 0
      %529 = vmatmul.mubr.bf16.gmra.mrb[0].mxu0 %v408
      %v530 = vpop.f32.mrb[0].mxu0
      %v531 = vadd.f32 %v431, %v530
      %v532 = vpop.f32.mrb[0].mxu0
      %v533 = vpop.f32.mrb[0].mxu0
      %v534 = vadd.f32 %v431, %v533
      %v535 = vpop.f32.mrb[0].mxu0
      %536 = vmatprep.mubr.bf16.mxu0 0
      %537 = vmatmul.mubr.bf16.gmra.mrb[0].mxu0 %v409
      %v538 = vpop.f32.mrb[0].mxu0
      %v539 = vadd.f32 %v431, %v538
      %v540 = vpop.f32.mrb[0].mxu0
      %v541 = vpop.f32.mrb[0].mxu0
      %v542 = vadd.f32 %v431, %v541
      %v543 = vpop.f32.mrb[0].mxu0
      %544 = vmatprep.mubr.bf16.mxu0 0
      %545 = vmatmul.mubr.bf16.gmra.mrb[0].mxu0 %v410
      %v546 = vpop.f32.mrb[0].mxu0
      %v547 = vadd.f32 %v431, %v546
      %v548 = vpop.f32.mrb[0].mxu0
      %v549 = vpop.f32.mrb[0].mxu0
      %v550 = vpop.f32.mrb[0].mxu0
      %551 = vdwg.mxu0
      %v552 = vmax.f32 %v515, 0.0
      %v553 = vmax.f32 %v518, 0.0
      %v554 = vmax.f32 %v523, 0.0
      %v555 = vmax.f32 %v526, 0.0
      %v556 = vmax.f32 %v531, 0.0
      %v557 = vmax.f32 %v534, 0.0
      %v558 = vmax.f32 %v539, 0.0
      %v559 = vmax.f32 %v542, 0.0
      %v560 = vmax.f32 %v547, 0.0
      %v561 = vpack.c.bf16 %v553, %v552
      %v562 = vpack.c.bf16 %v555, %v554
      %v563 = vpack.c.bf16 %v557, %v556
      %v564 = vpack.c.bf16 %v559, %v558
      %v565 = vpack.c.bf16 %v560, %v560
      %v566 = vld [vmem:[%s3] sm:$0xf]
      %v567 = vld [vmem:[%s3 + $0x4] sm:$0xf]
      %v568 = vld [vmem:[%s3 + $0x8] sm:$0xf]
      %v569 = vld [vmem:[%s3 + $0xc] sm:$0xf]
      %v570 = vld [vmem:[%s3 + $0x10] sm:$0xf]
      %v571 = vld [vmem:[%s3 + $0x14] sm:$0xf]
      %v572 = vld [vmem:[%s3 + $0x18] sm:$0xf]
      %v573 = vld [vmem:[%s3 + $0x1c] sm:$0xf]
      %v574 = vld [vmem:[%s3 + $0x20] sm:$0xf]
      %v575 = vld [vmem:[%s3 + $0x24] sm:$0xf]
      %v576 = vld [vmem:[%s3 + $0x28] sm:$0xf]
      %v577 = vld [vmem:[%s3 + $0x2c] sm:$0xf]
      %v578 = vld [vmem:[%s3 + $0x30] sm:$0xf]
      %v579 = vld [vmem:[%s3 + $0x34] sm:$0xf]
      %v580 = vld [vmem:[%s3 + $0x38] sm:$0xf]
      %v581 = vld [vmem:[%s3 + $0x3c] sm:$0xf]
      %v582 = vld [vmem:[%s5] sm:$0x1]
      %v584 = vlaneseq
      %v585 = vshrl.u32 %v584, 7
      %v586 = vsub.s32 0, %v585
      %v587 = vrot.slane %v582, %v586
      %v605 = vunpack.c.l.b16 %v566
      %v606 = vunpack.c.l.b16 %v567
      %v607 = vunpack.c.l.b16 %v568
      %v608 = vunpack.c.l.b16 %v569
      %v609 = vunpack.c.l.b16 %v570
      %v610 = vunpack.c.l.b16 %v571
      %v611 = vunpack.c.l.b16 %v572
      %v612 = vunpack.c.l.b16 %v573
      %v613 = vunpack.c.l.b16 %v574
      %v614 = vunpack.c.l.b16 %v575
      %v615 = vunpack.c.l.b16 %v576
      %v616 = vunpack.c.l.b16 %v577
      %v617 = vunpack.c.l.b16 %v578
      %v618 = vunpack.c.l.b16 %v579
      %v619 = vunpack.c.l.b16 %v580
      %v620 = vunpack.c.l.b16 %v581
      %v621 = vpack.c.b16 %v606, %v605
      %v622 = vpack.c.b16 %v608, %v607
      %v623 = vpack.c.b16 %v610, %v609
      %v624 = vpack.c.b16 %v612, %v611
      %v625 = vpack.c.b16 %v614, %v613
      %v626 = vpack.c.b16 %v616, %v615
      %v627 = vpack.c.b16 %v618, %v617
      %v628 = vpack.c.b16 %v620, %v619
      %637 = vmatprep.subr.bf16.mxu0 0
      %638 = vmatpush1.bf16.msra.mxu0 %v621
      %639 = vmatprep.subr.bf16.mxu0 0
      %640 = vmatpush1.bf16.msra.mxu0 %v622
      %641 = vmatprep.subr.bf16.mxu0 0
      %642 = vmatpush1.bf16.msra.mxu0 %v623
      %643 = vmatprep.subr.bf16.mxu0 0
      %644 = vmatpush1.bf16.msra.mxu0 %v624
      %645 = vmatprep.subr.bf16.mxu0 0
      %646 = vmatpush1.bf16.msra.mxu0 %v625
      %647 = vmatprep.subr.bf16.mxu0 0
      %648 = vmatpush1.bf16.msra.mxu0 %v626
      %649 = vmatprep.subr.bf16.mxu0 0
      %650 = vmatpush1.bf16.msra.mxu0 %v627
      %651 = vmatprep.subr.bf16.mxu0 0
      %652 = vmatpush1.bf16.msra.mxu0 %v628
      %653 = vmatprep.subr.bf16.mxu0 0
      %654 = vmatpush1.bf16.msra.mxu0 0
      %655 = vmatprep.subr.bf16.mxu0 0
      %656 = vmatpush1.bf16.msra.mxu0 0
      %657 = vmatprep.subr.bf16.mxu0 0
      %658 = vmatpush1.bf16.msra.mxu0 0
      %659 = vmatprep.subr.bf16.mxu0 0
      %660 = vmatpush1.bf16.msra.mxu0 0
      %661 = vmatprep.subr.bf16.mxu0 0
      %662 = vmatpush1.bf16.msra.mxu0 0
      %663 = vmatprep.subr.bf16.mxu0 0
      %664 = vmatpush1.bf16.msra.mxu0 0
      %665 = vmatprep.subr.bf16.mxu0 0
      %666 = vmatpush1.bf16.msra.mxu0 0
      %667 = vmatprep.subr.bf16.mxu0 0
      %668 = vmatpush1.bf16.msra.mxu0 0
      %669 = vmatprep.mubr.bf16.mxu0 0
      %670 = vmatmul.mubr.bf16.gmra.mrb[0].mxu0 %v561
      %v671 = vpop.f32.mrb[0].mxu0
      %v672 = vadd.f32 %v587, %v671
      %v673 = vpop.f32.mrb[0].mxu0
      %v674 = vpop.f32.mrb[0].mxu0
      %v675 = vadd.f32 %v587, %v674
      %v676 = vpop.f32.mrb[0].mxu0
      %677 = vmatprep.mubr.bf16.mxu0 0
      %678 = vmatmul.mubr.bf16.gmra.mrb[0].mxu0 %v562
      %v679 = vpop.f32.mrb[0].mxu0
      %v680 = vadd.f32 %v587, %v679
      %v681 = vpop.f32.mrb[0].mxu0
      %v682 = vpop.f32.mrb[0].mxu0
      %v683 = vadd.f32 %v587, %v682
      %v684 = vpop.f32.mrb[0].mxu0
      %685 = vmatprep.mubr.bf16.mxu0 0
      %686 = vmatmul.mubr.bf16.gmra.mrb[0].mxu0 %v563
      %v687 = vpop.f32.mrb[0].mxu0
      %v688 = vadd.f32 %v587, %v687
      %v689 = vpop.f32.mrb[0].mxu0
      %v690 = vpop.f32.mrb[0].mxu0
      %v691 = vadd.f32 %v587, %v690
      %v692 = vpop.f32.mrb[0].mxu0
      %693 = vmatprep.mubr.bf16.mxu0 0
      %694 = vmatmul.mubr.bf16.gmra.mrb[0].mxu0 %v564
      %v695 = vpop.f32.mrb[0].mxu0
      %v696 = vadd.f32 %v587, %v695
      %v697 = vpop.f32.mrb[0].mxu0
      %v698 = vpop.f32.mrb[0].mxu0
      %v699 = vadd.f32 %v587, %v698
      %v700 = vpop.f32.mrb[0].mxu0
      %701 = vmatprep.mubr.bf16.mxu0 0
      %702 = vmatmul.mubr.bf16.gmra.mrb[0].mxu0 %v565
      %v703 = vpop.f32.mrb[0].mxu0
      %v704 = vadd.f32 %v587, %v703
      %v705 = vpop.f32.mrb[0].mxu0
      %v706 = vpop.f32.mrb[0].mxu0
      %v707 = vpop.f32.mrb[0].mxu0
      %708 = vdwg.mxu0
      %vm709 = vcmask 23552
      %710 = vst.msk [vmem:[%s253] sm:$0xff] %vm709, %v672
      %711 = vst.msk [vmem:[%s253 + $0x8] sm:$0xff] %vm709, %v675
      %712 = vst.msk [vmem:[%s253 + $0x10] sm:$0xff] %vm709, %v680
      %713 = vst.msk [vmem:[%s253 + $0x18] sm:$0xff] %vm709, %v683
      %714 = vst.msk [vmem:[%s253 + $0x20] sm:$0xff] %vm709, %v688
      %715 = vst.msk [vmem:[%s253 + $0x28] sm:$0xff] %vm709, %v691
      %716 = vst.msk [vmem:[%s253 + $0x30] sm:$0xff] %vm709, %v696
      %717 = vst.msk [vmem:[%s253 + $0x38] sm:$0xff] %vm709, %v699
      %718 = vst.msk [vmem:[%s253 + $0x40] sm:$0xff] %vm709, %v704
      %s719 = smul.u32 9, %s17
      %p720 = scmp.lt.s32.totalorder %s719, 17
      %s721 = scalar_select %p720, %s719, 17
      %s722 = smul.addr %s721, 8
      %s723 = scalar_lea.vmem %s6, %s722
      // Predicated region
      $region45: #{tpu_custom_call.1} parent=43 // pred_check
        %p724 = pneg %p166
      $region46: #{tpu_custom_call.1} parent=43 // pred_check_branch
        %726 = sbr.rel (%p724) target = $region48
      $region47: #{tpu_custom_call.1} parent=43 // pred_region
        %s727 = smul.u32 9, %s17
      $region48: #{tpu_custom_call.1} parent=43 // pred_fallthru
        _
    $region44: #{tpu_custom_call.1} parent=5 // pred_fallthru
      _
    %p728 = scmp.le.s32.totalorder 2, %s12
    // Predicated region
    $region49: #{tpu_custom_call.1} parent=5 // pred_check
      %p729 = pneg %p728
    $region50: #{tpu_custom_call.1} parent=5 // pred_check_branch
      %731 = sbr.rel (%p729) target = $region52
    $region51: #{tpu_custom_call.1} parent=5 // pred_region
      %s732 = ssub.s32 %s12, 2
      // Predicated region
      $region53: #{tpu_custom_call.1} parent=51 // pred_check
        %p733 = pneg %p172
      $region54: #{tpu_custom_call.1} parent=51 // pred_check_branch
        %735 = sbr.rel (%p733) target = $region56
      $region55: #{tpu_custom_call.1} parent=51 // pred_region
        %s736 = smul.u32 9, %s18
        %p737 = scmp.lt.s32.totalorder %s736, 17
        %s738 = scalar_select %p737, %s736, 17
        %s739 = smul.addr %s738, 8
        %s740 = scalar_lea.vmem %s6, %s739
      $region56: #{tpu_custom_call.1} parent=51 // pred_fallthru
        _
    $region52: #{tpu_custom_call.1} parent=5 // pred_fallthru
      _
  $region6: #{tpu_custom_call.1} parent=0 // loop_footer
    %s16 = sadd.s32 1, %s12
  $region7: #{tpu_custom_call.1} parent=0 // loop_footer_branch
    %11 = sbr.rel target = $region3
  $region8: #{tpu_custom_call.1} parent=0 // loop_exit
    _

</llo_original>
